<compile_context>
chip_gen: v5e
topology: v5e:2x2
jax: 0.10.0
libtpu: 0.0.40
codegen_flags: <defaults>
</compile_context>

<pallas_src>
import jax
import jax.numpy as jnp
from jax import lax
from jax.experimental import pallas as pl
from jax.experimental.pallas import tpu as pltpu

BN_EPS = 1e-5
LANE = 128
SUBLANE = 8
NEG_INF = -1e30

# Set to jnp.bfloat16 on v6e/v7x to run the dots on the bf16-native MXU and
# halve weight/activation DMA bytes (accumulation stays f32 via
# preferred_element_type; BN / ReLU / softmax element-wise math stays f32, which
# is also what v5e requires).  Default is exact f32 so the 1e-5-class reference
# check below stays meaningful.
MATMUL_DTYPE = jnp.float32


def _round_up(n, m):
    return ((n + m - 1) // m) * m


# ---------------------------------------------------------------------------
# Parameter init (PyTorch nn.Linear / nn.BatchNorm1d defaults, torch layout)
# ---------------------------------------------------------------------------
def init_params(key, input_dim, memory_dim, target_dim, embedding_dim):
    flat = embedding_dim + memory_dim
    ks = jax.random.split(key, 4)

    def lin(k, out_d, in_d):
        bound = 1.0 / jnp.sqrt(in_d)
        kw, kb = jax.random.split(k)
        w = jax.random.uniform(kw, (out_d, in_d), jnp.float32, -bound, bound)
        b = jax.random.uniform(kb, (out_d,), jnp.float32, -bound, bound)
        return w, b

    wE, bE = lin(ks[0], embedding_dim, input_dim)
    w1, b1 = lin(ks[1], flat, flat)
    w2, b2 = lin(ks[2], flat, flat)
    wd, bd = lin(ks[3], target_dim, flat)
    return dict(
        wE=wE, bE=bE, gE=jnp.ones((embedding_dim,)), btE=jnp.zeros((embedding_dim,)),
        w1=w1, b1=b1, g1=jnp.ones((flat,)), bt1=jnp.zeros((flat,)),
        w2=w2, b2=b2, g2=jnp.ones((flat,)), bt2=jnp.zeros((flat,)),
        wd=wd, bd=bd,
    )


# ---------------------------------------------------------------------------
# One-time transform: transpose, lane-pad and pack params into kernel layout
# ---------------------------------------------------------------------------
def prepare_params(params):
    embedding_dim, input_dim = params["wE"].shape
    target_dim, flat = params["wd"].shape
    memory_dim = flat - embedding_dim

    in_p = _round_up(input_dim, LANE)
    mem_p = _round_up(memory_dim, LANE)
    emb_p = _round_up(embedding_dim, LANE)
    flat_p = _round_up(flat, LANE)
    tgt_p = _round_up(target_dim, LANE)
    row_p = max(emb_p, flat_p, tgt_p)

    def pad_w(w_t, rows_p, cols_p):            # w_t is (in, out)
        r, c = w_t.shape
        return (jnp.zeros((rows_p, cols_p), MATMUL_DTYPE)
                .at[:r, :c].set(w_t.astype(MATMUL_DTYPE)))

    w1t = params["w1"].T                        # (flat, flat) = (in, out)
    prep = dict(
        wE=pad_w(params["wE"].T, in_p, emb_p),
        w1e=pad_w(w1t[:embedding_dim, :], emb_p, flat_p),   # multiplies embedding
        w1m=pad_w(w1t[embedding_dim:, :], mem_p, flat_p),   # multiplies memory
        w2=pad_w(params["w2"].T, flat_p, flat_p),
        wd=pad_w(params["wd"].T, flat_p, tgt_p),
    )

    # Packed per-column parameter rows: gE, btE, g1, bt1, g2, bt2, bd.
    # (Linear biases bE/b1/b2 are intentionally NOT packed: they are cancelled
    #  by the training-mode BatchNorm mean subtraction.)
    rows = jnp.zeros((SUBLANE, row_p), jnp.float32)
    rows = rows.at[0, :embedding_dim].set(params["gE"])
    rows = rows.at[1, :embedding_dim].set(params["btE"])
    rows = rows.at[2, :flat].set(params["g1"])
    rows = rows.at[3, :flat].set(params["bt1"])
    rows = rows.at[4, :flat].set(params["g2"])
    rows = rows.at[5, :flat].set(params["bt2"])
    rows = rows.at[6, :].set(NEG_INF)                 # softmax ignores padded lanes
    rows = rows.at[6, :target_dim].set(params["bd"])
    prep["rows"] = rows

    prep["dims"] = dict(
        input_dim=input_dim, memory_dim=memory_dim, embedding_dim=embedding_dim,
        target_dim=target_dim, flat=flat,
        in_p=in_p, mem_p=mem_p, emb_p=emb_p, flat_p=flat_p, tgt_p=tgt_p,
        row_p=row_p,
    )
    return prep


# ---------------------------------------------------------------------------
# Kernel
# ---------------------------------------------------------------------------
def _build_kernel(batch, tile_b, dims, need_mask):
    emb_p = dims["emb_p"]
    flat_p = dims["flat_p"]
    tgt_p = dims["tgt_p"]
    inv_b = 1.0 / batch

    def _mm(a, w_ref):
        return jnp.dot(a.astype(MATMUL_DTYPE), w_ref[...],
                       preferred_element_type=jnp.float32)

    def _finalize(stats_ref, gamma, beta):
        # (sum, sumsq) rows -> (scale, shift) rows, in place.
        mean = stats_ref[0:1, :] * inv_b
        var = stats_ref[1:2, :] * inv_b - mean * mean      # biased batch variance
        scale = gamma * lax.rsqrt(var + BN_EPS)
        stats_ref[0:1, :] = scale
        stats_ref[1:2, :] = beta - mean * scale

    def kernel(x_ref, mem_ref, wE_ref, w1e_ref, w1m_ref, w2_ref, wd_ref,
               rows_ref, out_ref, statsE, stats1, stats2):
        p = pl.program_id(0)        # phase
        b = pl.program_id(1)        # batch tile

        # -------- per-phase init / finalize (first batch tile of each phase) --------
        @pl.when(jnp.logical_and(p == 0, b == 0))
        def _():
            statsE[...] = jnp.zeros_like(statsE)

        @pl.when(jnp.logical_and(p == 1, b == 0))
        def _():
            _finalize(statsE, rows_ref[0:1, :emb_p], rows_ref[1:2, :emb_p])
            stats1[...] = jnp.zeros_like(stats1)

        @pl.when(jnp.logical_and(p == 2, b == 0))
        def _():
            _finalize(stats1, rows_ref[2:3, :flat_p], rows_ref[3:4, :flat_p])
            stats2[...] = jnp.zeros_like(stats2)

        @pl.when(jnp.logical_and(p == 3, b == 0))
        def _():
            _finalize(stats2, rows_ref[4:5, :flat_p], rows_ref[5:6, :flat_p])

        # -------- mask for padded rows of the last batch tile (if any) --------
        if need_mask:
            row = b * tile_b + lax.broadcasted_iota(jnp.int32, (tile_b, 1), 0)
            mask = (row < batch).astype(jnp.float32)          # (tile_b, 1)
        else:
            mask = None

        def _accum(stats_ref, h):
            hm = h if mask is None else h * mask
            stats_ref[0:1, :] = stats_ref[0:1, :] + jnp.sum(hm, axis=0, keepdims=True)
            stats_ref[1:2, :] = stats_ref[1:2, :] + jnp.sum(hm * h, axis=0, keepdims=True)

        # -------- embedding pre-activation (needed in every phase); no bias --------
        hE = _mm(x_ref[...], wE_ref)                          # (tile_b, emb_p) f32

        @pl.when(p == 0)
        def _():
            _accum(statsE, hE)

        @pl.when(p >= 1)
        def _():
            emb = jnp.maximum(hE * statsE[0:1, :] + statsE[1:2, :], 0.0)
            # cat((emb, memory), dim=1) @ W1.T as a split matmul; both K blocks
            # are already 128-aligned, so no concat copy is needed.  No bias.
            h1 = _mm(emb, w1e_ref) + _mm(mem_ref[...], w1m_ref)

            @pl.when(p == 1)
            def _():
                _accum(stats1, h1)

            @pl.when(p >= 2)
            def _():
                a1 = jnp.maximum(h1 * stats1[0:1, :] + stats1[1:2, :], 0.0)
                h2 = _mm(a1, w2_ref)                          # no bias

                @pl.when(p == 2)
                def _():
                    _accum(stats2, h2)

                @pl.when(p == 3)
                def _():
                    a2 = jnp.maximum(h2 * stats2[0:1, :] + stats2[1:2, :], 0.0)
                    logits = _mm(a2, wd_ref) + rows_ref[6:7, :tgt_p]
                    m = jnp.max(logits, axis=1, keepdims=True)
                    e = jnp.exp(logits - m)
                    denom = jnp.sum(e, axis=1, keepdims=True)
                    out_ref[...] = e * pl.reciprocal(denom, approx=False)

    return kernel


# ---------------------------------------------------------------------------
# Wrapper
# ---------------------------------------------------------------------------
def emb_dann_forward(x, memory, prep, *, batch_tile=128):
    d = prep["dims"]
    batch = x.shape[0]
    tile_b = batch_tile if batch >= batch_tile else _round_up(batch, SUBLANE)
    n_tiles = (batch + tile_b - 1) // tile_b
    batch_p = n_tiles * tile_b

    x_p = (jnp.zeros((batch_p, d["in_p"]), MATMUL_DTYPE)
           .at[:batch, :d["input_dim"]].set(x.astype(MATMUL_DTYPE)))
    m_p = (jnp.zeros((batch_p, d["mem_p"]), MATMUL_DTYPE)
           .at[:batch, :d["memory_dim"]].set(memory.astype(MATMUL_DTYPE)))

    kernel = _build_kernel(batch, tile_b, d, need_mask=(batch != batch_p))

    resident = lambda p, b: (0, 0)       # weights / packed rows: VMEM-resident
    per_tile = lambda p, b: (b, 0)       # activations / output: batch-tiled

    out = pl.pallas_call(
        kernel,
        out_shape=jax.ShapeDtypeStruct((batch_p, d["tgt_p"]), jnp.float32),
        grid_spec=pltpu.PrefetchScalarGridSpec(
            num_scalar_prefetch=0,
            grid=(4, n_tiles),                         # (phase, batch tile)
            in_specs=[
                pl.BlockSpec((tile_b, d["in_p"]), per_tile),
                pl.BlockSpec((tile_b, d["mem_p"]), per_tile),
                pl.BlockSpec((d["in_p"], d["emb_p"]), resident),
                pl.BlockSpec((d["emb_p"], d["flat_p"]), resident),
                pl.BlockSpec((d["mem_p"], d["flat_p"]), resident),
                pl.BlockSpec((d["flat_p"], d["flat_p"]), resident),
                pl.BlockSpec((d["flat_p"], d["tgt_p"]), resident),
                pl.BlockSpec((SUBLANE, d["row_p"]), resident),
            ],
            out_specs=pl.BlockSpec((tile_b, d["tgt_p"]), per_tile),
            scratch_shapes=[
                pltpu.VMEM((2, d["emb_p"]), jnp.float32),    # statsE: sum/sumsq -> scale/shift
                pltpu.VMEM((2, d["flat_p"]), jnp.float32),   # stats1
                pltpu.VMEM((2, d["flat_p"]), jnp.float32),   # stats2
            ],
        ),
        compiler_params=pltpu.CompilerParams(
            # both axes carry state in the stats scratch -> sequential
            dimension_semantics=("arbitrary", "arbitrary"),
            vmem_limit_bytes=32 * 1024 * 1024,
        ),
    )(x_p, m_p, prep["wE"], prep["w1e"], prep["w1m"], prep["w2"], prep["wd"],
      prep["rows"])
    return out[:batch, :d["target_dim"]]


# ---------------------------------------------------------------------------
# Pure-JAX reference (matches the PyTorch module in training mode)
# ---------------------------------------------------------------------------
def reference_forward(x, memory, p):
    def bn_relu(h, g, b):
        mu = h.mean(axis=0, keepdims=True)
        var = ((h - mu) ** 2).mean(axis=0, keepdims=True)    # biased variance
        return jnp.maximum(g * (h - mu) / jnp.sqrt(var + BN_EPS) + b, 0.0)

    emb = x @ p["wE"].T + p["bE"]
    emb = bn_relu(emb, p["gE"], p["btE"])
    flat = jnp.concatenate([emb, memory], axis=1)
    flat = bn_relu(flat @ p["w1"].T + p["b1"], p["g1"], p["bt1"])
    flat = bn_relu(flat @ p["w2"].T + p["b2"], p["g2"], p["bt2"])
    logits = flat @ p["wd"].T + p["bd"]
    return jax.nn.softmax(logits, axis=1)


if __name__ == "__main__":
    input_dim, memory_dim, target_dim, embedding_dim = 16, 16, 8, 16

    key = jax.random.PRNGKey(0)
    k_x, k_m, k_p, k_x2, k_m2 = jax.random.split(key, 5)
    params = init_params(k_p, input_dim, memory_dim, target_dim, embedding_dim)
    prep = prepare_params(params)        # one-time weight transform / padding

    # Case 1: batch = 8 (single batch tile, no row mask).
    batch = 8
    x = jax.random.normal(k_x, (batch, input_dim), jnp.float32)
    memory = jax.random.normal(k_m, (batch, memory_dim), jnp.float32)
    out = jax.block_until_ready(emb_dann_forward(x, memory, prep))
    ref = reference_forward(x, memory, params)
    assert out.shape == (batch, target_dim)
    assert jnp.allclose(out, ref, atol=2e-5, rtol=2e-5), "mismatch vs reference (B=8)"
    assert jnp.allclose(out.sum(axis=1), 1.0, atol=1e-5), "softmax rows must sum to 1"

    # Case 2: ragged batch = 20 with an 8-row batch tile — exercises multiple
    # batch tiles, the cross-tile BN accumulation and the padded-row mask.
    batch2 = 20
    x2 = jax.random.normal(k_x2, (batch2, input_dim), jnp.float32)
    mem2 = jax.random.normal(k_m2, (batch2, memory_dim), jnp.float32)
    out2 = jax.block_until_ready(emb_dann_forward(x2, mem2, prep, batch_tile=8))
    ref2 = reference_forward(x2, mem2, params)
    assert out2.shape == (batch2, target_dim)
    assert jnp.allclose(out2, ref2, atol=2e-5, rtol=2e-5), "mismatch vs reference (B=20)"
    assert jnp.allclose(out2.sum(axis=1), 1.0, atol=1e-5), "softmax rows must sum to 1"

    print("KERNEL_OK")
</pallas_src>

<mosaic_0001>
module attributes {stable_mosaic.version = 11 : i64} {
  func.func @kernel(%arg0: i32, %arg1: i32, %arg2: memref<8x128xf32, #tpu.memory_space<vmem>>, %arg3: memref<8x128xf32, #tpu.memory_space<vmem>>, %arg4: memref<128x128xf32, #tpu.memory_space<vmem>>, %arg5: memref<128x128xf32, #tpu.memory_space<vmem>>, %arg6: memref<128x128xf32, #tpu.memory_space<vmem>>, %arg7: memref<128x128xf32, #tpu.memory_space<vmem>>, %arg8: memref<128x128xf32, #tpu.memory_space<vmem>>, %arg9: memref<8x128xf32, #tpu.memory_space<vmem>>, %arg10: memref<8x128xf32, #tpu.memory_space<vmem>>, %arg11: memref<2x128xf32, #tpu.memory_space<vmem>>, %arg12: memref<2x128xf32, #tpu.memory_space<vmem>>, %arg13: memref<2x128xf32, #tpu.memory_space<vmem>>) attributes {dimension_semantics = [#tpu.dimension_semantics<arbitrary>, #tpu.dimension_semantics<arbitrary>], iteration_bounds = array<i64: 4, 1>, scalar_prefetch = 0 : i64, scratch_operands = 3 : i64, tpu.core_type = #tpu.core_type<tc>, window_params = [{transform_indices = @transform_0, window_bounds = array<i64: 8, 128>}, {transform_indices = @transform_1, window_bounds = array<i64: 8, 128>}, {pipeline_mode = #tpu.pipeline_mode<synchronous>, transform_indices = @transform_2, window_bounds = array<i64: 128, 128>}, {pipeline_mode = #tpu.pipeline_mode<synchronous>, transform_indices = @transform_3, window_bounds = array<i64: 128, 128>}, {pipeline_mode = #tpu.pipeline_mode<synchronous>, transform_indices = @transform_4, window_bounds = array<i64: 128, 128>}, {pipeline_mode = #tpu.pipeline_mode<synchronous>, transform_indices = @transform_5, window_bounds = array<i64: 128, 128>}, {pipeline_mode = #tpu.pipeline_mode<synchronous>, transform_indices = @transform_6, window_bounds = array<i64: 128, 128>}, {pipeline_mode = #tpu.pipeline_mode<synchronous>, transform_indices = @transform_7, window_bounds = array<i64: 8, 128>}, {transform_indices = @transform_8, window_bounds = array<i64: 8, 128>}]} {
    %c0_i32 = arith.constant 0 : i32
    %0 = arith.cmpi eq, %arg0, %c0_i32 : i32
    %c0_i32_0 = arith.constant 0 : i32
    %1 = arith.cmpi eq, %arg1, %c0_i32_0 : i32
    %2 = arith.andi %0, %1 : i1
    %3 = arith.extui %2 : i1 to i32
    %c0_i32_1 = arith.constant 0 : i32
    %4 = arith.cmpi ne, %3, %c0_i32_1 : i32
    scf.if %4 {
      %cst_15 = arith.constant 0.000000e+00 : f32
      %29 = vector.broadcast %cst_15 : f32 to vector<2x128xf32>
      %c0_16 = arith.constant 0 : index
      %c0_17 = arith.constant 0 : index
      %30 = vector.load %arg11[%c0_16, %c0_17] : memref<2x128xf32, #tpu.memory_space<vmem>>, vector<2x128xf32>
      tpu.vector_store %arg11[%c0_16, %c0_17], %29 {strides = array<i32>} : memref<2x128xf32, #tpu.memory_space<vmem>>, vector<2x128xf32>,
    } else {
    }
    %c1_i32 = arith.constant 1 : i32
    %5 = arith.cmpi eq, %arg0, %c1_i32 : i32
    %c0_i32_2 = arith.constant 0 : i32
    %6 = arith.cmpi eq, %arg1, %c0_i32_2 : i32
    %7 = arith.andi %5, %6 : i1
    %8 = arith.extui %7 : i1 to i32
    %c0_i32_3 = arith.constant 0 : i32
    %9 = arith.cmpi ne, %8, %c0_i32_3 : i32
    scf.if %9 {
      %c0_15 = arith.constant 0 : index
      %c0_16 = arith.constant 0 : index
      %29 = vector.load %arg9[%c0_15, %c0_16] : memref<8x128xf32, #tpu.memory_space<vmem>>, vector<1x128xf32>
      %c1 = arith.constant 1 : index
      %c0_17 = arith.constant 0 : index
      %30 = vector.load %arg9[%c1, %c0_17] : memref<8x128xf32, #tpu.memory_space<vmem>>, vector<1x128xf32>
      %c0_18 = arith.constant 0 : index
      %c0_19 = arith.constant 0 : index
      %31 = vector.load %arg11[%c0_18, %c0_19] : memref<2x128xf32, #tpu.memory_space<vmem>>, vector<1x128xf32>
      %cst_20 = arith.constant 1.250000e-01 : f32
      %32 = vector.broadcast %cst_20 : f32 to vector<1x128xf32>
      %33 = arith.mulf %31, %32 : vector<1x128xf32>
      %c1_21 = arith.constant 1 : index
      %c0_22 = arith.constant 0 : index
      %34 = vector.load %arg11[%c1_21, %c0_22] : memref<2x128xf32, #tpu.memory_space<vmem>>, vector<1x128xf32>
      %cst_23 = arith.constant 1.250000e-01 : f32
      %35 = vector.broadcast %cst_23 : f32 to vector<1x128xf32>
      %36 = arith.mulf %34, %35 : vector<1x128xf32>
      %37 = arith.mulf %33, %33 : vector<1x128xf32>
      %38 = arith.subf %36, %37 : vector<1x128xf32>
      %cst_24 = arith.constant 9.99999974E-6 : f32
      %39 = vector.broadcast %cst_24 : f32 to vector<1x128xf32>
      %40 = arith.addf %38, %39 : vector<1x128xf32>
      %41 = math.rsqrt %40 : vector<1x128xf32>
      %42 = arith.mulf %29, %41 : vector<1x128xf32>
      %c0_25 = arith.constant 0 : index
      %c0_26 = arith.constant 0 : index
      %43 = vector.load %arg11[%c0_25, %c0_26] : memref<2x128xf32, #tpu.memory_space<vmem>>, vector<1x128xf32>
      tpu.vector_store %arg11[%c0_25, %c0_26], %42 {strides = array<i32>} : memref<2x128xf32, #tpu.memory_space<vmem>>, vector<1x128xf32>,
      %44 = arith.mulf %33, %42 : vector<1x128xf32>
      %45 = arith.subf %30, %44 : vector<1x128xf32>
      %c1_27 = arith.constant 1 : index
      %c0_28 = arith.constant 0 : index
      %46 = vector.load %arg11[%c1_27, %c0_28] : memref<2x128xf32, #tpu.memory_space<vmem>>, vector<1x128xf32>
      tpu.vector_store %arg11[%c1_27, %c0_28], %45 {strides = array<i32>} : memref<2x128xf32, #tpu.memory_space<vmem>>, vector<1x128xf32>,
      %cst_29 = arith.constant 0.000000e+00 : f32
      %47 = vector.broadcast %cst_29 : f32 to vector<2x128xf32>
      %c0_30 = arith.constant 0 : index
      %c0_31 = arith.constant 0 : index
      %48 = vector.load %arg12[%c0_30, %c0_31] : memref<2x128xf32, #tpu.memory_space<vmem>>, vector<2x128xf32>
      tpu.vector_store %arg12[%c0_30, %c0_31], %47 {strides = array<i32>} : memref<2x128xf32, #tpu.memory_space<vmem>>, vector<2x128xf32>,
    } else {
    }
    %c2_i32 = arith.constant 2 : i32
    %10 = arith.cmpi eq, %arg0, %c2_i32 : i32
    %c0_i32_4 = arith.constant 0 : i32
    %11 = arith.cmpi eq, %arg1, %c0_i32_4 : i32
    %12 = arith.andi %10, %11 : i1
    %13 = arith.extui %12 : i1 to i32
    %c0_i32_5 = arith.constant 0 : i32
    %14 = arith.cmpi ne, %13, %c0_i32_5 : i32
    scf.if %14 {
      %c2 = arith.constant 2 : index
      %c0_15 = arith.constant 0 : index
      %29 = vector.load %arg9[%c2, %c0_15] : memref<8x128xf32, #tpu.memory_space<vmem>>, vector<1x128xf32>
      %c3 = arith.constant 3 : index
      %c0_16 = arith.constant 0 : index
      %30 = vector.load %arg9[%c3, %c0_16] : memref<8x128xf32, #tpu.memory_space<vmem>>, vector<1x128xf32>
      %c0_17 = arith.constant 0 : index
      %c0_18 = arith.constant 0 : index
      %31 = vector.load %arg12[%c0_17, %c0_18] : memref<2x128xf32, #tpu.memory_space<vmem>>, vector<1x128xf32>
      %cst_19 = arith.constant 1.250000e-01 : f32
      %32 = vector.broadcast %cst_19 : f32 to vector<1x128xf32>
      %33 = arith.mulf %31, %32 : vector<1x128xf32>
      %c1 = arith.constant 1 : index
      %c0_20 = arith.constant 0 : index
      %34 = vector.load %arg12[%c1, %c0_20] : memref<2x128xf32, #tpu.memory_space<vmem>>, vector<1x128xf32>
      %cst_21 = arith.constant 1.250000e-01 : f32
      %35 = vector.broadcast %cst_21 : f32 to vector<1x128xf32>
      %36 = arith.mulf %34, %35 : vector<1x128xf32>
      %37 = arith.mulf %33, %33 : vector<1x128xf32>
      %38 = arith.subf %36, %37 : vector<1x128xf32>
      %cst_22 = arith.constant 9.99999974E-6 : f32
      %39 = vector.broadcast %cst_22 : f32 to vector<1x128xf32>
      %40 = arith.addf %38, %39 : vector<1x128xf32>
      %41 = math.rsqrt %40 : vector<1x128xf32>
      %42 = arith.mulf %29, %41 : vector<1x128xf32>
      %c0_23 = arith.constant 0 : index
      %c0_24 = arith.constant 0 : index
      %43 = vector.load %arg12[%c0_23, %c0_24] : memref<2x128xf32, #tpu.memory_space<vmem>>, vector<1x128xf32>
      tpu.vector_store %arg12[%c0_23, %c0_24], %42 {strides = array<i32>} : memref<2x128xf32, #tpu.memory_space<vmem>>, vector<1x128xf32>,
      %44 = arith.mulf %33, %42 : vector<1x128xf32>
      %45 = arith.subf %30, %44 : vector<1x128xf32>
      %c1_25 = arith.constant 1 : index
      %c0_26 = arith.constant 0 : index
      %46 = vector.load %arg12[%c1_25, %c0_26] : memref<2x128xf32, #tpu.memory_space<vmem>>, vector<1x128xf32>
      tpu.vector_store %arg12[%c1_25, %c0_26], %45 {strides = array<i32>} : memref<2x128xf32, #tpu.memory_space<vmem>>, vector<1x128xf32>,
      %cst_27 = arith.constant 0.000000e+00 : f32
      %47 = vector.broadcast %cst_27 : f32 to vector<2x128xf32>
      %c0_28 = arith.constant 0 : index
      %c0_29 = arith.constant 0 : index
      %48 = vector.load %arg13[%c0_28, %c0_29] : memref<2x128xf32, #tpu.memory_space<vmem>>, vector<2x128xf32>
      tpu.vector_store %arg13[%c0_28, %c0_29], %47 {strides = array<i32>} : memref<2x128xf32, #tpu.memory_space<vmem>>, vector<2x128xf32>,
    } else {
    }
    %c3_i32 = arith.constant 3 : i32
    %15 = arith.cmpi eq, %arg0, %c3_i32 : i32
    %c0_i32_6 = arith.constant 0 : i32
    %16 = arith.cmpi eq, %arg1, %c0_i32_6 : i32
    %17 = arith.andi %15, %16 : i1
    %18 = arith.extui %17 : i1 to i32
    %c0_i32_7 = arith.constant 0 : i32
    %19 = arith.cmpi ne, %18, %c0_i32_7 : i32
    scf.if %19 {
      %c4 = arith.constant 4 : index
      %c0_15 = arith.constant 0 : index
      %29 = vector.load %arg9[%c4, %c0_15] : memref<8x128xf32, #tpu.memory_space<vmem>>, vector<1x128xf32>
      %c5 = arith.constant 5 : index
      %c0_16 = arith.constant 0 : index
      %30 = vector.load %arg9[%c5, %c0_16] : memref<8x128xf32, #tpu.memory_space<vmem>>, vector<1x128xf32>
      %c0_17 = arith.constant 0 : index
      %c0_18 = arith.constant 0 : index
      %31 = vector.load %arg13[%c0_17, %c0_18] : memref<2x128xf32, #tpu.memory_space<vmem>>, vector<1x128xf32>
      %cst_19 = arith.constant 1.250000e-01 : f32
      %32 = vector.broadcast %cst_19 : f32 to vector<1x128xf32>
      %33 = arith.mulf %31, %32 : vector<1x128xf32>
      %c1 = arith.constant 1 : index
      %c0_20 = arith.constant 0 : index
      %34 = vector.load %arg13[%c1, %c0_20] : memref<2x128xf32, #tpu.memory_space<vmem>>, vector<1x128xf32>
      %cst_21 = arith.constant 1.250000e-01 : f32
      %35 = vector.broadcast %cst_21 : f32 to vector<1x128xf32>
      %36 = arith.mulf %34, %35 : vector<1x128xf32>
      %37 = arith.mulf %33, %33 : vector<1x128xf32>
      %38 = arith.subf %36, %37 : vector<1x128xf32>
      %cst_22 = arith.constant 9.99999974E-6 : f32
      %39 = vector.broadcast %cst_22 : f32 to vector<1x128xf32>
      %40 = arith.addf %38, %39 : vector<1x128xf32>
      %41 = math.rsqrt %40 : vector<1x128xf32>
      %42 = arith.mulf %29, %41 : vector<1x128xf32>
      %c0_23 = arith.constant 0 : index
      %c0_24 = arith.constant 0 : index
      %43 = vector.load %arg13[%c0_23, %c0_24] : memref<2x128xf32, #tpu.memory_space<vmem>>, vector<1x128xf32>
      tpu.vector_store %arg13[%c0_23, %c0_24], %42 {strides = array<i32>} : memref<2x128xf32, #tpu.memory_space<vmem>>, vector<1x128xf32>,
      %44 = arith.mulf %33, %42 : vector<1x128xf32>
      %45 = arith.subf %30, %44 : vector<1x128xf32>
      %c1_25 = arith.constant 1 : index
      %c0_26 = arith.constant 0 : index
      %46 = vector.load %arg13[%c1_25, %c0_26] : memref<2x128xf32, #tpu.memory_space<vmem>>, vector<1x128xf32>
      tpu.vector_store %arg13[%c1_25, %c0_26], %45 {strides = array<i32>} : memref<2x128xf32, #tpu.memory_space<vmem>>, vector<1x128xf32>,
    } else {
    }
    %c0 = arith.constant 0 : index
    %c0_8 = arith.constant 0 : index
    %20 = vector.load %arg2[%c0, %c0_8] : memref<8x128xf32, #tpu.memory_space<vmem>>, vector<8x128xf32>
    %c0_9 = arith.constant 0 : index
    %c0_10 = arith.constant 0 : index
    %21 = vector.load %arg4[%c0_9, %c0_10] : memref<128x128xf32, #tpu.memory_space<vmem>>, vector<128x128xf32>
    %cst = arith.constant dense<0.000000e+00> : vector<8x128xf32>
    %22 = tpu.matmul %20, %21, %cst {dimension_numbers = #tpu.dot_dimension_numbers<[1], [0], [0], [1], [0, 0, 1, 1], [], []>} : vector<8x128xf32>, vector<128x128xf32>, vector<8x128xf32> -> vector<8x128xf32>
    %c0_i32_11 = arith.constant 0 : i32
    %23 = arith.cmpi eq, %arg0, %c0_i32_11 : i32
    %24 = arith.extui %23 : i1 to i32
    %c0_i32_12 = arith.constant 0 : i32
    %25 = arith.cmpi ne, %24, %c0_i32_12 : i32
    scf.if %25 {
      %c0_15 = arith.constant 0 : index
      %c0_16 = arith.constant 0 : index
      %29 = vector.load %arg11[%c0_15, %c0_16] : memref<2x128xf32, #tpu.memory_space<vmem>>, vector<1x128xf32>
      %cst_17 = arith.constant dense<0.000000e+00> : vector<128xf32>
      %30 = vector.multi_reduction <add>, %22, %cst_17 [0] : vector<8x128xf32> to vector<128xf32>
      %31 = vector.shape_cast %30 : vector<128xf32> to vector<1x128xf32>
      %32 = arith.addf %29, %31 : vector<1x128xf32>
      %c0_18 = arith.constant 0 : index
      %c0_19 = arith.constant 0 : index
      %33 = vector.load %arg11[%c0_18, %c0_19] : memref<2x128xf32, #tpu.memory_space<vmem>>, vector<1x128xf32>
      tpu.vector_store %arg11[%c0_18, %c0_19], %32 {strides = array<i32>} : memref<2x128xf32, #tpu.memory_space<vmem>>, vector<1x128xf32>,
      %c1 = arith.constant 1 : index
      %c0_20 = arith.constant 0 : index
      %34 = vector.load %arg11[%c1, %c0_20] : memref<2x128xf32, #tpu.memory_space<vmem>>, vector<1x128xf32>
      %35 = arith.mulf %22, %22 : vector<8x128xf32>
      %cst_21 = arith.constant dense<0.000000e+00> : vector<128xf32>
      %36 = vector.multi_reduction <add>, %35, %cst_21 [0] : vector<8x128xf32> to vector<128xf32>
      %37 = vector.shape_cast %36 : vector<128xf32> to vector<1x128xf32>
      %38 = arith.addf %34, %37 : vector<1x128xf32>
      %c1_22 = arith.constant 1 : index
      %c0_23 = arith.constant 0 : index
      %39 = vector.load %arg11[%c1_22, %c0_23] : memref<2x128xf32, #tpu.memory_space<vmem>>, vector<1x128xf32>
      tpu.vector_store %arg11[%c1_22, %c0_23], %38 {strides = array<i32>} : memref<2x128xf32, #tpu.memory_space<vmem>>, vector<1x128xf32>,
    } else {
    }
    %c1_i32_13 = arith.constant 1 : i32
    %26 = arith.cmpi sge, %arg0, %c1_i32_13 : i32
    %27 = arith.extui %26 : i1 to i32
    %c0_i32_14 = arith.constant 0 : i32
    %28 = arith.cmpi ne, %27, %c0_i32_14 : i32
    scf.if %28 {
      %c0_15 = arith.constant 0 : index
      %c0_16 = arith.constant 0 : index
      %29 = vector.load %arg11[%c0_15, %c0_16] : memref<2x128xf32, #tpu.memory_space<vmem>>, vector<1x128xf32>
      %30 = vector.broadcast %29 : vector<1x128xf32> to vector<8x128xf32>
      %31 = arith.mulf %22, %30 : vector<8x128xf32>
      %c1 = arith.constant 1 : index
      %c0_17 = arith.constant 0 : index
      %32 = vector.load %arg11[%c1, %c0_17] : memref<2x128xf32, #tpu.memory_space<vmem>>, vector<1x128xf32>
      %33 = vector.broadcast %32 : vector<1x128xf32> to vector<8x128xf32>
      %34 = arith.addf %31, %33 : vector<8x128xf32>
      %cst_18 = arith.constant 0.000000e+00 : f32
      %35 = vector.broadcast %cst_18 : f32 to vector<8x128xf32>
      %36 = arith.maximumf %34, %35 : vector<8x128xf32>
      %c0_19 = arith.constant 0 : index
      %c0_20 = arith.constant 0 : index
      %37 = vector.load %arg5[%c0_19, %c0_20] : memref<128x128xf32, #tpu.memory_space<vmem>>, vector<128x128xf32>
      %cst_21 = arith.constant dense<0.000000e+00> : vector<8x128xf32>
      %38 = tpu.matmul %36, %37, %cst_21 {dimension_numbers = #tpu.dot_dimension_numbers<[1], [0], [0], [1], [0, 0, 1, 1], [], []>} : vector<8x128xf32>, vector<128x128xf32>, vector<8x128xf32> -> vector<8x128xf32>
      %c0_22 = arith.constant 0 : index
      %c0_23 = arith.constant 0 : index
      %39 = vector.load %arg3[%c0_22, %c0_23] : memref<8x128xf32, #tpu.memory_space<vmem>>, vector<8x128xf32>
      %c0_24 = arith.constant 0 : index
      %c0_25 = arith.constant 0 : index
      %40 = vector.load %arg6[%c0_24, %c0_25] : memref<128x128xf32, #tpu.memory_space<vmem>>, vector<128x128xf32>
      %cst_26 = arith.constant dense<0.000000e+00> : vector<8x128xf32>
      %41 = tpu.matmul %39, %40, %cst_26 {dimension_numbers = #tpu.dot_dimension_numbers<[1], [0], [0], [1], [0, 0, 1, 1], [], []>} : vector<8x128xf32>, vector<128x128xf32>, vector<8x128xf32> -> vector<8x128xf32>
      %42 = arith.addf %38, %41 : vector<8x128xf32>
      %c1_i32_27 = arith.constant 1 : i32
      %43 = arith.cmpi eq, %arg0, %c1_i32_27 : i32
      %44 = arith.extui %43 : i1 to i32
      %c0_i32_28 = arith.constant 0 : i32
      %45 = arith.cmpi ne, %44, %c0_i32_28 : i32
      scf.if %45 {
        %c0_31 = arith.constant 0 : index
        %c0_32 = arith.constant 0 : index
        %49 = vector.load %arg12[%c0_31, %c0_32] : memref<2x128xf32, #tpu.memory_space<vmem>>, vector<1x128xf32>
        %cst_33 = arith.constant dense<0.000000e+00> : vector<128xf32>
        %50 = vector.multi_reduction <add>, %42, %cst_33 [0] : vector<8x128xf32> to vector<128xf32>
        %51 = vector.shape_cast %50 : vector<128xf32> to vector<1x128xf32>
        %52 = arith.addf %49, %51 : vector<1x128xf32>
        %c0_34 = arith.constant 0 : index
        %c0_35 = arith.constant 0 : index
        %53 = vector.load %arg12[%c0_34, %c0_35] : memref<2x128xf32, #tpu.memory_space<vmem>>, vector<1x128xf32>
        tpu.vector_store %arg12[%c0_34, %c0_35], %52 {strides = array<i32>} : memref<2x128xf32, #tpu.memory_space<vmem>>, vector<1x128xf32>,
        %c1_36 = arith.constant 1 : index
        %c0_37 = arith.constant 0 : index
        %54 = vector.load %arg12[%c1_36, %c0_37] : memref<2x128xf32, #tpu.memory_space<vmem>>, vector<1x128xf32>
        %55 = arith.mulf %42, %42 : vector<8x128xf32>
        %cst_38 = arith.constant dense<0.000000e+00> : vector<128xf32>
        %56 = vector.multi_reduction <add>, %55, %cst_38 [0] : vector<8x128xf32> to vector<128xf32>
        %57 = vector.shape_cast %56 : vector<128xf32> to vector<1x128xf32>
        %58 = arith.addf %54, %57 : vector<1x128xf32>
        %c1_39 = arith.constant 1 : index
        %c0_40 = arith.constant 0 : index
        %59 = vector.load %arg12[%c1_39, %c0_40] : memref<2x128xf32, #tpu.memory_space<vmem>>, vector<1x128xf32>
        tpu.vector_store %arg12[%c1_39, %c0_40], %58 {strides = array<i32>} : memref<2x128xf32, #tpu.memory_space<vmem>>, vector<1x128xf32>,
      } else {
      }
      %c2_i32_29 = arith.constant 2 : i32
      %46 = arith.cmpi sge, %arg0, %c2_i32_29 : i32
      %47 = arith.extui %46 : i1 to i32
      %c0_i32_30 = arith.constant 0 : i32
      %48 = arith.cmpi ne, %47, %c0_i32_30 : i32
      scf.if %48 {
        %c0_31 = arith.constant 0 : index
        %c0_32 = arith.constant 0 : index
        %49 = vector.load %arg12[%c0_31, %c0_32] : memref<2x128xf32, #tpu.memory_space<vmem>>, vector<1x128xf32>
        %50 = vector.broadcast %49 : vector<1x128xf32> to vector<8x128xf32>
        %51 = arith.mulf %42, %50 : vector<8x128xf32>
        %c1_33 = arith.constant 1 : index
        %c0_34 = arith.constant 0 : index
        %52 = vector.load %arg12[%c1_33, %c0_34] : memref<2x128xf32, #tpu.memory_space<vmem>>, vector<1x128xf32>
        %53 = vector.broadcast %52 : vector<1x128xf32> to vector<8x128xf32>
        %54 = arith.addf %51, %53 : vector<8x128xf32>
        %cst_35 = arith.constant 0.000000e+00 : f32
        %55 = vector.broadcast %cst_35 : f32 to vector<8x128xf32>
        %56 = arith.maximumf %54, %55 : vector<8x128xf32>
        %c0_36 = arith.constant 0 : index
        %c0_37 = arith.constant 0 : index
        %57 = vector.load %arg7[%c0_36, %c0_37] : memref<128x128xf32, #tpu.memory_space<vmem>>, vector<128x128xf32>
        %cst_38 = arith.constant dense<0.000000e+00> : vector<8x128xf32>
        %58 = tpu.matmul %56, %57, %cst_38 {dimension_numbers = #tpu.dot_dimension_numbers<[1], [0], [0], [1], [0, 0, 1, 1], [], []>} : vector<8x128xf32>, vector<128x128xf32>, vector<8x128xf32> -> vector<8x128xf32>
        %c2_i32_39 = arith.constant 2 : i32
        %59 = arith.cmpi eq, %arg0, %c2_i32_39 : i32
        %60 = arith.extui %59 : i1 to i32
        %c0_i32_40 = arith.constant 0 : i32
        %61 = arith.cmpi ne, %60, %c0_i32_40 : i32
        scf.if %61 {
          %c0_43 = arith.constant 0 : index
          %c0_44 = arith.constant 0 : index
          %65 = vector.load %arg13[%c0_43, %c0_44] : memref<2x128xf32, #tpu.memory_space<vmem>>, vector<1x128xf32>
          %cst_45 = arith.constant dense<0.000000e+00> : vector<128xf32>
          %66 = vector.multi_reduction <add>, %58, %cst_45 [0] : vector<8x128xf32> to vector<128xf32>
          %67 = vector.shape_cast %66 : vector<128xf32> to vector<1x128xf32>
          %68 = arith.addf %65, %67 : vector<1x128xf32>
          %c0_46 = arith.constant 0 : index
          %c0_47 = arith.constant 0 : index
          %69 = vector.load %arg13[%c0_46, %c0_47] : memref<2x128xf32, #tpu.memory_space<vmem>>, vector<1x128xf32>
          tpu.vector_store %arg13[%c0_46, %c0_47], %68 {strides = array<i32>} : memref<2x128xf32, #tpu.memory_space<vmem>>, vector<1x128xf32>,
          %c1_48 = arith.constant 1 : index
          %c0_49 = arith.constant 0 : index
          %70 = vector.load %arg13[%c1_48, %c0_49] : memref<2x128xf32, #tpu.memory_space<vmem>>, vector<1x128xf32>
          %71 = arith.mulf %58, %58 : vector<8x128xf32>
          %cst_50 = arith.constant dense<0.000000e+00> : vector<128xf32>
          %72 = vector.multi_reduction <add>, %71, %cst_50 [0] : vector<8x128xf32> to vector<128xf32>
          %73 = vector.shape_cast %72 : vector<128xf32> to vector<1x128xf32>
          %74 = arith.addf %70, %73 : vector<1x128xf32>
          %c1_51 = arith.constant 1 : index
          %c0_52 = arith.constant 0 : index
          %75 = vector.load %arg13[%c1_51, %c0_52] : memref<2x128xf32, #tpu.memory_space<vmem>>, vector<1x128xf32>
          tpu.vector_store %arg13[%c1_51, %c0_52], %74 {strides = array<i32>} : memref<2x128xf32, #tpu.memory_space<vmem>>, vector<1x128xf32>,
        } else {
        }
        %c3_i32_41 = arith.constant 3 : i32
        %62 = arith.cmpi eq, %arg0, %c3_i32_41 : i32
        %63 = arith.extui %62 : i1 to i32
        %c0_i32_42 = arith.constant 0 : i32
        %64 = arith.cmpi ne, %63, %c0_i32_42 : i32
        scf.if %64 {
          %c0_43 = arith.constant 0 : index
          %c0_44 = arith.constant 0 : index
          %65 = vector.load %arg13[%c0_43, %c0_44] : memref<2x128xf32, #tpu.memory_space<vmem>>, vector<1x128xf32>
          %66 = vector.broadcast %65 : vector<1x128xf32> to vector<8x128xf32>
          %67 = arith.mulf %58, %66 : vector<8x128xf32>
          %c1_45 = arith.constant 1 : index
          %c0_46 = arith.constant 0 : index
          %68 = vector.load %arg13[%c1_45, %c0_46] : memref<2x128xf32, #tpu.memory_space<vmem>>, vector<1x128xf32>
          %69 = vector.broadcast %68 : vector<1x128xf32> to vector<8x128xf32>
          %70 = arith.addf %67, %69 : vector<8x128xf32>
          %cst_47 = arith.constant 0.000000e+00 : f32
          %71 = vector.broadcast %cst_47 : f32 to vector<8x128xf32>
          %72 = arith.maximumf %70, %71 : vector<8x128xf32>
          %c0_48 = arith.constant 0 : index
          %c0_49 = arith.constant 0 : index
          %73 = vector.load %arg8[%c0_48, %c0_49] : memref<128x128xf32, #tpu.memory_space<vmem>>, vector<128x128xf32>
          %cst_50 = arith.constant dense<0.000000e+00> : vector<8x128xf32>
          %74 = tpu.matmul %72, %73, %cst_50 {dimension_numbers = #tpu.dot_dimension_numbers<[1], [0], [0], [1], [0, 0, 1, 1], [], []>} : vector<8x128xf32>, vector<128x128xf32>, vector<8x128xf32> -> vector<8x128xf32>
          %c6 = arith.constant 6 : index
          %c0_51 = arith.constant 0 : index
          %75 = vector.load %arg9[%c6, %c0_51] : memref<8x128xf32, #tpu.memory_space<vmem>>, vector<1x128xf32>
          %76 = vector.broadcast %75 : vector<1x128xf32> to vector<8x128xf32>
          %77 = arith.addf %74, %76 : vector<8x128xf32>
          %cst_52 = arith.constant dense<0xFF800000> : vector<8xf32>
          %78 = vector.multi_reduction <maximumf>, %77, %cst_52 [1] : vector<8x128xf32> to vector<8xf32>
          %79 = vector.shape_cast %78 : vector<8xf32> to vector<8x1xf32>
          %80 = vector.broadcast %79 : vector<8x1xf32> to vector<8x128xf32>
          %81 = arith.subf %77, %80 : vector<8x128xf32>
          %82 = math.exp %81 : vector<8x128xf32>
          %cst_53 = arith.constant dense<0.000000e+00> : vector<8xf32>
          %83 = vector.multi_reduction <add>, %82, %cst_53 [1] : vector<8x128xf32> to vector<8xf32>
          %84 = vector.shape_cast %83 : vector<8xf32> to vector<8x1xf32>
          %85 = tpu.reciprocal %84 : vector<8x1xf32> -> vector<8x1xf32>
          %86 = vector.broadcast %85 : vector<8x1xf32> to vector<8x128xf32>
          %87 = arith.mulf %82, %86 : vector<8x128xf32>
          %c0_54 = arith.constant 0 : index
          %c0_55 = arith.constant 0 : index
          %88 = vector.load %arg10[%c0_54, %c0_55] : memref<8x128xf32, #tpu.memory_space<vmem>>, vector<8x128xf32>
          tpu.vector_store %arg10[%c0_54, %c0_55], %87 {strides = array<i32>} : memref<8x128xf32, #tpu.memory_space<vmem>>, vector<8x128xf32>,
        } else {
        }
      } else {
      }
    } else {
    }
    return
  }
  func.func @transform_0(%arg0: i32, %arg1: i32) -> (i32, i32) {
    %c0_i32 = arith.constant 0 : i32
    %c0_i32_0 = arith.constant 0 : i32
    return %arg1, %c0_i32 : i32, i32
  }
  func.func @transform_1(%arg0: i32, %arg1: i32) -> (i32, i32) {
    %c0_i32 = arith.constant 0 : i32
    %c0_i32_0 = arith.constant 0 : i32
    return %arg1, %c0_i32 : i32, i32
  }
  func.func @transform_2(%arg0: i32, %arg1: i32) -> (i32, i32) {
    %c0_i32 = arith.constant 0 : i32
    %c0_i32_0 = arith.constant 0 : i32
    %c0_i32_1 = arith.constant 0 : i32
    return %c0_i32, %c0_i32_0 : i32, i32
  }
  func.func @transform_3(%arg0: i32, %arg1: i32) -> (i32, i32) {
    %c0_i32 = arith.constant 0 : i32
    %c0_i32_0 = arith.constant 0 : i32
    %c0_i32_1 = arith.constant 0 : i32
    return %c0_i32, %c0_i32_0 : i32, i32
  }
  func.func @transform_4(%arg0: i32, %arg1: i32) -> (i32, i32) {
    %c0_i32 = arith.constant 0 : i32
    %c0_i32_0 = arith.constant 0 : i32
    %c0_i32_1 = arith.constant 0 : i32
    return %c0_i32, %c0_i32_0 : i32, i32
  }
  func.func @transform_5(%arg0: i32, %arg1: i32) -> (i32, i32) {
    %c0_i32 = arith.constant 0 : i32
    %c0_i32_0 = arith.constant 0 : i32
    %c0_i32_1 = arith.constant 0 : i32
    return %c0_i32, %c0_i32_0 : i32, i32
  }
  func.func @transform_6(%arg0: i32, %arg1: i32) -> (i32, i32) {
    %c0_i32 = arith.constant 0 : i32
    %c0_i32_0 = arith.constant 0 : i32
    %c0_i32_1 = arith.constant 0 : i32
    return %c0_i32, %c0_i32_0 : i32, i32
  }
  func.func @transform_7(%arg0: i32, %arg1: i32) -> (i32, i32) {
    %c0_i32 = arith.constant 0 : i32
    %c0_i32_0 = arith.constant 0 : i32
    %c0_i32_1 = arith.constant 0 : i32
    return %c0_i32, %c0_i32_0 : i32, i32
  }
  func.func @transform_8(%arg0: i32, %arg1: i32) -> (i32, i32) {
    %c0_i32 = arith.constant 0 : i32
    %c0_i32_0 = arith.constant 0 : i32
    return %arg1, %c0_i32 : i32, i32
  }
}

</mosaic_0001>

<llo_original>
// kernel: tpu_custom_call.1
$region0: #{tpu_custom_call.1}
  #allocation0 [shape = 'u32[]', space=smem, size = 0x4, offset = 0x4, fixed_abs, tag = 'smem constant byte address 0x4 - core index']
  #allocation1 [shape = 'u32[72,128]{1,0:T(1,128)}', space=vmem, size = 0x9000, scoped, tag = 'internal scratch']
  #allocation2 [shape = 'f32[2,128]{1,0:T(2,128)}', space=vmem, size = 0x400, scoped, tag = 'scratch operand']
  #allocation3 [shape = 'f32[2,128]{1,0:T(2,128)}', space=vmem, size = 0x400, scoped, tag = 'scratch operand']
  #allocation4 [shape = 'f32[2,128]{1,0:T(2,128)}', space=vmem, size = 0x400, scoped, tag = 'scratch operand']
  %s0 = inlined_call_operand.hbm [shape: f32[8,128], index: 0, kind: input, shape index: {}]
  %s1 = inlined_call_operand.hbm [shape: f32[8,128], index: 1, kind: input, shape index: {}]
  %s2 = inlined_call_operand.hbm [shape: f32[128,128], index: 2, kind: input, shape index: {}]
  %s3 = inlined_call_operand.hbm [shape: f32[128,128], index: 3, kind: input, shape index: {}]
  %s4 = inlined_call_operand.hbm [shape: f32[128,128], index: 4, kind: input, shape index: {}]
  %s5 = inlined_call_operand.hbm [shape: f32[128,128], index: 5, kind: input, shape index: {}]
  %s6 = inlined_call_operand.hbm [shape: f32[128,128], index: 6, kind: input, shape index: {}]
  %s7 = inlined_call_operand.hbm [shape: f32[8,128], index: 7, kind: input, shape index: {}]
  %s8 = inlined_call_operand.hbm [shape: f32[8,128], index: 8, kind: output, shape index: {}]
  %s9 = sld [smem:[#allocation0]]
  $region137: #{tpu_custom_call.1} parent=0
    _
  %s11 = ssub.s32 1, %s9
  %s12 = scalar_select 0, %s11, %s9
  $region1: #{tpu_custom_call.1} parent=0
    #allocation5 [shape = 'u8[4096]{0}', space=vmem, size = 0x1000, scoped, tag = 'input window, operand 0, single buffered']
    #allocation6 [shape = 's32[2]{0}', space=sflag, size = 0x8, scoped, tag = 'scoped memory for tpu_custom_call.1']
    #allocation7 [shape = 's32[2]{0}', space=sflag, size = 0x8, scoped, tag = 'scoped memory for tpu_custom_call.1']
    #allocation8 [shape = 'u8[4096]{0}', space=vmem, size = 0x1000, scoped, tag = 'input window, operand 1, single buffered']
    #allocation9 [shape = 's32[1]{0}', space=sflag, size = 0x4, scoped, tag = 'scoped memory for tpu_custom_call.1']
    #allocation10 [shape = 'u8[65536]{0}', space=vmem, size = 0x10000, scoped, tag = 'input window, operand 2, single buffered']
    #allocation11 [shape = 'u8[65536]{0}', space=vmem, size = 0x10000, scoped, tag = 'input window, operand 3, single buffered']
    #allocation12 [shape = 's32[1]{0}', space=sflag, size = 0x4, scoped, tag = 'scoped memory for tpu_custom_call.1']
    #allocation13 [shape = 'u8[65536]{0}', space=vmem, size = 0x10000, scoped, tag = 'input window, operand 4, single buffered']
    #allocation14 [shape = 'u8[65536]{0}', space=vmem, size = 0x10000, scoped, tag = 'input window, operand 5, single buffered']
    #allocation15 [shape = 's32[1]{0}', space=sflag, size = 0x4, scoped, tag = 'scoped memory for tpu_custom_call.1']
    #allocation16 [shape = 'u8[65536]{0}', space=vmem, size = 0x10000, scoped, tag = 'input window, operand 6, single buffered']
    #allocation17 [shape = 'u8[4096]{0}', space=vmem, size = 0x1000, scoped, tag = 'input window, operand 7, single buffered']
    #allocation18 [shape = 's32[1]{0}', space=sflag, size = 0x4, scoped, tag = 'scoped memory for tpu_custom_call.1']
    #allocation19 [shape = 'u8[4096]{0}', space=vmem, size = 0x1000, scoped, tag = 'output window, operand 0, single buffered']
    %13 = vsyncpa [#allocation6], 0
    %14 = vsyncpa [#allocation9], 0
    %15 = vsyncpa [#allocation12], 0
    %16 = vsyncpa [#allocation15], 0
    %17 = vsyncpa [#allocation18], 0
    %18 = vsyncpa [#allocation7], 0
    loop: start=0, step=1, limit=6
    $region2: #{tpu_custom_call.1} parent=1 // loop_pre_header
      _
    $region3: #{tpu_custom_call.1} parent=1 // loop_header
      %s20 = sphi 0, %s24
      %p21 = scmp.ge.s32.totalorder %s20, 6
      %s27 = sphi 0, %s39
      %s28 = sphi 0, %s35
      %s29 = sphi 0, %s27
      %s30 = sphi 0, %s28
      %s31 = sphi 0, %s29
      %s32 = sphi 0, %s30
      %s42 = sphi 0, %s44
      %s45 = sphi 0, %s42
      %s46 = sphi 0, %s45
      %s62 = sphi 0, %s46
      %s68 = sphi 0, %s70
      %s71 = sphi 0, %s68
      %s72 = sphi 0, %s71
      %s88 = sphi 0, %s72
      %s92 = sphi 0, %s92
      %s94 = sphi 0, %s92
      %s95 = sphi 0, %s94
      %s109 = sphi 0, %s95
      %s113 = sphi 0, %s113
      %s115 = sphi 0, %s113
      %s116 = sphi 0, %s115
      %s130 = sphi 0, %s116
      %s134 = sphi 0, %s134
      %s136 = sphi 0, %s134
      %s137 = sphi 0, %s136
      %s151 = sphi 0, %s137
      %s155 = sphi 0, %s155
      %s157 = sphi 0, %s155
      %s158 = sphi 0, %s157
      %s172 = sphi 0, %s158
      %s176 = sphi 0, %s176
      %s178 = sphi 0, %s176
      %s179 = sphi 0, %s178
      %s193 = sphi 0, %s179
      %s197 = sphi 0, %s197
      %s199 = sphi 0, %s197
      %s200 = sphi 0, %s199
      %s214 = sphi 0, %s200
      %s220 = sphi 0, %s222
      %s223 = sphi 0, %s220
      %s224 = sphi 0, %s223
      %s240 = sphi 0, %s224
    $region4: #{tpu_custom_call.1} parent=1 // loop_header_branch
      %23 = sbr.rel (%p21) target = $region8
    $region5: #{tpu_custom_call.1} parent=1 // loop_body
      %s25 = ssub.s32 %s20, 1
      %s26 = ssub.s32 %s20, 2
      %s33 = sadd.s32 1, %s28
      %p34 = scmp.ge.s32.totalorder %s33, 1
      %s35 = scalar_select %p34, 0, %s33
      %s36 = sadd.s32 1, %s27
      %s37 = scalar_select %p34, %s36, %s27
      %p38 = scmp.ge.s32.totalorder %s37, 4
      %s39 = scalar_select %p38, 0, %s37
      %s40 = ssub.s32 %s28, %s35
      %p41 = scmp.eq.s32.totalorder %s40, 0
      %s43 = sadd.s32 %s42, 1
      %s44 = scalar_select %p41, %s42, %s43
      %p47 = pneg %p41
      %p48 = scmp.eq.s32.totalorder %s20, 3
      %p49 = por %p47, %p48
      %p50 = scmp.ne.s32.totalorder %s42, %s45
      %p51 = scmp.eq.s32.totalorder %s20, 0
      %p52 = por %p50, %p51
      %p53 = scmp.ne.s32.totalorder %s42, %s45
      %p54 = scmp.eq.s32.totalorder %s25, 3
      %p55 = por %p53, %p54
      %p56 = scmp.ne.s32.totalorder %s45, %s46
      %p57 = scmp.eq.s32.totalorder %s25, 0
      %p58 = por %p56, %p57
      %p59 = scmp.ne.s32.totalorder %s45, %s46
      %p60 = scmp.eq.s32.totalorder %s26, 3
      %p61 = por %p59, %p60
      %p63 = scmp.ne.s32.totalorder %s46, %s62
      %p64 = scmp.eq.s32.totalorder %s26, 0
      %p65 = por %p63, %p64
      %s66 = ssub.s32 %s28, %s35
      %p67 = scmp.eq.s32.totalorder %s66, 0
      %s69 = sadd.s32 %s68, 1
      %s70 = scalar_select %p67, %s68, %s69
      %p73 = pneg %p67
      %p74 = scmp.eq.s32.totalorder %s20, 3
      %p75 = por %p73, %p74
      %p76 = scmp.ne.s32.totalorder %s68, %s71
      %p77 = scmp.eq.s32.totalorder %s20, 0
      %p78 = por %p76, %p77
      %p79 = scmp.ne.s32.totalorder %s68, %s71
      %p80 = scmp.eq.s32.totalorder %s25, 3
      %p81 = por %p79, %p80
      %p82 = scmp.ne.s32.totalorder %s71, %s72
      %p83 = scmp.eq.s32.totalorder %s25, 0
      %p84 = por %p82, %p83
      %p85 = scmp.ne.s32.totalorder %s71, %s72
      %p86 = scmp.eq.s32.totalorder %s26, 3
      %p87 = por %p85, %p86
      %p89 = scmp.ne.s32.totalorder %s72, %s88
      %p90 = scmp.eq.s32.totalorder %s26, 0
      %p91 = por %p89, %p90
      %s93 = sadd.s32 %s92, 1
      %p96 = scmp.eq.s32.totalorder %s20, 3
      %p97 = scmp.ne.s32.totalorder %s92, %s94
      %p98 = scmp.eq.s32.totalorder %s20, 0
      %p99 = por %p97, %p98
      %p100 = scmp.ne.s32.totalorder %s92, %s94
      %p101 = scmp.eq.s32.totalorder %s25, 3
      %p102 = por %p100, %p101
      %p103 = scmp.ne.s32.totalorder %s94, %s95
      %p104 = scmp.eq.s32.totalorder %s25, 0
      %p105 = por %p103, %p104
      %p106 = scmp.ne.s32.totalorder %s94, %s95
      %p107 = scmp.eq.s32.totalorder %s26, 3
      %p108 = por %p106, %p107
      %p110 = scmp.ne.s32.totalorder %s95, %s109
      %p111 = scmp.eq.s32.totalorder %s26, 0
      %p112 = por %p110, %p111
      %s114 = sadd.s32 %s113, 1
      %p117 = scmp.eq.s32.totalorder %s20, 3
      %p118 = scmp.ne.s32.totalorder %s113, %s115
      %p119 = scmp.eq.s32.totalorder %s20, 0
      %p120 = por %p118, %p119
      %p121 = scmp.ne.s32.totalorder %s113, %s115
      %p122 = scmp.eq.s32.totalorder %s25, 3
      %p123 = por %p121, %p122
      %p124 = scmp.ne.s32.totalorder %s115, %s116
      %p125 = scmp.eq.s32.totalorder %s25, 0
      %p126 = por %p124, %p125
      %p127 = scmp.ne.s32.totalorder %s115, %s116
      %p128 = scmp.eq.s32.totalorder %s26, 3
      %p129 = por %p127, %p128
      %p131 = scmp.ne.s32.totalorder %s116, %s130
      %p132 = scmp.eq.s32.totalorder %s26, 0
      %p133 = por %p131, %p132
      %s135 = sadd.s32 %s134, 1
      %p138 = scmp.eq.s32.totalorder %s20, 3
      %p139 = scmp.ne.s32.totalorder %s134, %s136
      %p140 = scmp.eq.s32.totalorder %s20, 0
      %p141 = por %p139, %p140
      %p142 = scmp.ne.s32.totalorder %s134, %s136
      %p143 = scmp.eq.s32.totalorder %s25, 3
      %p144 = por %p142, %p143
      %p145 = scmp.ne.s32.totalorder %s136, %s137
      %p146 = scmp.eq.s32.totalorder %s25, 0
      %p147 = por %p145, %p146
      %p148 = scmp.ne.s32.totalorder %s136, %s137
      %p149 = scmp.eq.s32.totalorder %s26, 3
      %p150 = por %p148, %p149
      %p152 = scmp.ne.s32.totalorder %s137, %s151
      %p153 = scmp.eq.s32.totalorder %s26, 0
      %p154 = por %p152, %p153
      %s156 = sadd.s32 %s155, 1
      %p159 = scmp.eq.s32.totalorder %s20, 3
      %p160 = scmp.ne.s32.totalorder %s155, %s157
      %p161 = scmp.eq.s32.totalorder %s20, 0
      %p162 = por %p160, %p161
      %p163 = scmp.ne.s32.totalorder %s155, %s157
      %p164 = scmp.eq.s32.totalorder %s25, 3
      %p165 = por %p163, %p164
      %p166 = scmp.ne.s32.totalorder %s157, %s158
      %p167 = scmp.eq.s32.totalorder %s25, 0
      %p168 = por %p166, %p167
      %p169 = scmp.ne.s32.totalorder %s157, %s158
      %p170 = scmp.eq.s32.totalorder %s26, 3
      %p171 = por %p169, %p170
      %p173 = scmp.ne.s32.totalorder %s158, %s172
      %p174 = scmp.eq.s32.totalorder %s26, 0
      %p175 = por %p173, %p174
      %s177 = sadd.s32 %s176, 1
      %p180 = scmp.eq.s32.totalorder %s20, 3
      %p181 = scmp.ne.s32.totalorder %s176, %s178
      %p182 = scmp.eq.s32.totalorder %s20, 0
      %p183 = por %p181, %p182
      %p184 = scmp.ne.s32.totalorder %s176, %s178
      %p185 = scmp.eq.s32.totalorder %s25, 3
      %p186 = por %p184, %p185
      %p187 = scmp.ne.s32.totalorder %s178, %s179
      %p188 = scmp.eq.s32.totalorder %s25, 0
      %p189 = por %p187, %p188
      %p190 = scmp.ne.s32.totalorder %s178, %s179
      %p191 = scmp.eq.s32.totalorder %s26, 3
      %p192 = por %p190, %p191
      %p194 = scmp.ne.s32.totalorder %s179, %s193
      %p195 = scmp.eq.s32.totalorder %s26, 0
      %p196 = por %p194, %p195
      %s198 = sadd.s32 %s197, 1
      %p201 = scmp.eq.s32.totalorder %s20, 3
      %p202 = scmp.ne.s32.totalorder %s197, %s199
      %p203 = scmp.eq.s32.totalorder %s20, 0
      %p204 = por %p202, %p203
      %p205 = scmp.ne.s32.totalorder %s197, %s199
      %p206 = scmp.eq.s32.totalorder %s25, 3
      %p207 = por %p205, %p206
      %p208 = scmp.ne.s32.totalorder %s199, %s200
      %p209 = scmp.eq.s32.totalorder %s25, 0
      %p210 = por %p208, %p209
      %p211 = scmp.ne.s32.totalorder %s199, %s200
      %p212 = scmp.eq.s32.totalorder %s26, 3
      %p213 = por %p211, %p212
      %p215 = scmp.ne.s32.totalorder %s200, %s214
      %p216 = scmp.eq.s32.totalorder %s26, 0
      %p217 = por %p215, %p216
      %s218 = ssub.s32 %s28, %s35
      %p219 = scmp.eq.s32.totalorder %s218, 0
      %s221 = sadd.s32 %s220, 1
      %s222 = scalar_select %p219, %s220, %s221
      %p225 = pneg %p219
      %p226 = scmp.eq.s32.totalorder %s20, 3
      %p227 = por %p225, %p226
      %p228 = scmp.ne.s32.totalorder %s220, %s223
      %p229 = scmp.eq.s32.totalorder %s20, 0
      %p230 = por %p228, %p229
      %p231 = scmp.ne.s32.totalorder %s220, %s223
      %p232 = scmp.eq.s32.totalorder %s25, 3
      %p233 = por %p231, %p232
      %p234 = scmp.ne.s32.totalorder %s223, %s224
      %p235 = scmp.eq.s32.totalorder %s25, 0
      %p236 = por %p234, %p235
      %p237 = scmp.ne.s32.totalorder %s223, %s224
      %p238 = scmp.eq.s32.totalorder %s26, 3
      %p239 = por %p237, %p238
      %p241 = scmp.ne.s32.totalorder %s224, %s240
      %p242 = scmp.eq.s32.totalorder %s26, 0
      %p243 = por %p241, %p242
      %p244 = scmp.le.s32.totalorder 1, %s20
      %p245 = scmp.lt.s32.totalorder %s20, 5
      %p246 = pnand %p244, %p245
      %p247 = pneg %p246
      // Predicated region
      $region9: #{tpu_custom_call.1} parent=5 // pred_check
        _
      $region10: #{tpu_custom_call.1} parent=5 // pred_check_branch
        %249 = sbr.rel (%p246) target = $region12
      $region11: #{tpu_custom_call.1} parent=5 // pred_region
        %s250 = ssub.s32 %s20, 1
        // Predicated region
        $region13: #{tpu_custom_call.1} parent=11 // pred_check
          %p251 = pneg %p58
        $region14: #{tpu_custom_call.1} parent=11 // pred_check_branch
          %253 = sbr.rel (%p251) target = $region16
        $region15: #{tpu_custom_call.1} parent=11 // pred_region
          %255 = vsyncadd [#allocation6], 0
          %s256 = smul.addr %s30, 8
          %s257 = scalar_lea.hbm %s0, %s256
          %s259 = sshll.u32 %s257, 4
          %s260 = int_to_ptr.hbm [resolvable:$true] %s259
          %s261 = sshll.u32 [#allocation5], 4
          %s262 = int_to_ptr.vmem [resolvable:$true] %s261
          %264 = dma.hbm_to_vmem [thread:$0]  %s260, 128, %s262, [#allocation6]
        $region16: #{tpu_custom_call.1} parent=11 // pred_fallthru
          _
        // Predicated region
        $region17: #{tpu_custom_call.1} parent=11 // pred_check
          %p265 = pneg %p84
        $region18: #{tpu_custom_call.1} parent=11 // pred_check_branch
          %267 = sbr.rel (%p265) target = $region20
        $region19: #{tpu_custom_call.1} parent=11 // pred_region
          %269 = vsyncadd [#allocation9], 0
          %s270 = smul.addr %s30, 8
          %s271 = scalar_lea.hbm %s1, %s270
          %s273 = sshll.u32 %s271, 4
          %s274 = int_to_ptr.hbm [resolvable:$true] %s273
          %s275 = sshll.u32 [#allocation8], 4
          %s276 = int_to_ptr.vmem [resolvable:$true] %s275
          %278 = dma.hbm_to_vmem [thread:$0]  %s274, 128, %s276, [#allocation9]
        $region20: #{tpu_custom_call.1} parent=11 // pred_fallthru
          _
        // Predicated region
        $region21: #{tpu_custom_call.1} parent=11 // pred_check
          %p279 = pneg %p105
        $region22: #{tpu_custom_call.1} parent=11 // pred_check_branch
          %281 = sbr.rel (%p279) target = $region24
        $region23: #{tpu_custom_call.1} parent=11 // pred_region
          %283 = vsyncadd [#allocation9], 0
          %s284 = sshll.u32 %s2, 4
          %s285 = int_to_ptr.hbm [resolvable:$true] %s284
          %s286 = sshll.u32 [#allocation10], 4
          %s287 = int_to_ptr.vmem [resolvable:$true] %s286
          %292 = dma.hbm_to_vmem [thread:$0]  %s285, 2048, %s287, [#allocation9], 128, 128, 8
        $region24: #{tpu_custom_call.1} parent=11 // pred_fallthru
          _
        // Predicated region
        $region25: #{tpu_custom_call.1} parent=11 // pred_check
          %p293 = pneg %p126
        $region26: #{tpu_custom_call.1} parent=11 // pred_check_branch
          %295 = sbr.rel (%p293) target = $region28
        $region27: #{tpu_custom_call.1} parent=11 // pred_region
          %297 = vsyncadd [#allocation12], 0
          %s298 = sshll.u32 %s3, 4
          %s299 = int_to_ptr.hbm [resolvable:$true] %s298
          %s300 = sshll.u32 [#allocation11], 4
          %s301 = int_to_ptr.vmem [resolvable:$true] %s300
          %306 = dma.hbm_to_vmem [thread:$0]  %s299, 2048, %s301, [#allocation12], 128, 128, 8
        $region28: #{tpu_custom_call.1} parent=11 // pred_fallthru
          _
        // Predicated region
        $region29: #{tpu_custom_call.1} parent=11 // pred_check
          %p307 = pneg %p147
        $region30: #{tpu_custom_call.1} parent=11 // pred_check_branch
          %309 = sbr.rel (%p307) target = $region32
        $region31: #{tpu_custom_call.1} parent=11 // pred_region
          %311 = vsyncadd [#allocation12], 0
          %s312 = sshll.u32 %s4, 4
          %s313 = int_to_ptr.hbm [resolvable:$true] %s312
          %s314 = sshll.u32 [#allocation13], 4
          %s315 = int_to_ptr.vmem [resolvable:$true] %s314
          %320 = dma.hbm_to_vmem [thread:$0]  %s313, 2048, %s315, [#allocation12], 128, 128, 8
        $region32: #{tpu_custom_call.1} parent=11 // pred_fallthru
          _
        // Predicated region
        $region33: #{tpu_custom_call.1} parent=11 // pred_check
          %p321 = pneg %p168
        $region34: #{tpu_custom_call.1} parent=11 // pred_check_branch
          %323 = sbr.rel (%p321) target = $region36
        $region35: #{tpu_custom_call.1} parent=11 // pred_region
          %325 = vsyncadd [#allocation15], 0
          %s326 = sshll.u32 %s5, 4
          %s327 = int_to_ptr.hbm [resolvable:$true] %s326
          %s328 = sshll.u32 [#allocation14], 4
          %s329 = int_to_ptr.vmem [resolvable:$true] %s328
          %334 = dma.hbm_to_vmem [thread:$0]  %s327, 2048, %s329, [#allocation15], 128, 128, 8
        $region36: #{tpu_custom_call.1} parent=11 // pred_fallthru
          _
        // Predicated region
        $region37: #{tpu_custom_call.1} parent=11 // pred_check
          %p335 = pneg %p189
        $region38: #{tpu_custom_call.1} parent=11 // pred_check_branch
          %337 = sbr.rel (%p335) target = $region40
        $region39: #{tpu_custom_call.1} parent=11 // pred_region
          %339 = vsyncadd [#allocation15], 0
          %s340 = sshll.u32 %s6, 4
          %s341 = int_to_ptr.hbm [resolvable:$true] %s340
          %s342 = sshll.u32 [#allocation16], 4
          %s343 = int_to_ptr.vmem [resolvable:$true] %s342
          %348 = dma.hbm_to_vmem [thread:$0]  %s341, 2048, %s343, [#allocation15], 128, 128, 8
        $region40: #{tpu_custom_call.1} parent=11 // pred_fallthru
          _
        // Predicated region
        $region41: #{tpu_custom_call.1} parent=11 // pred_check
          %p349 = pneg %p210
        $region42: #{tpu_custom_call.1} parent=11 // pred_check_branch
          %351 = sbr.rel (%p349) target = $region44
        $region43: #{tpu_custom_call.1} parent=11 // pred_region
          %353 = vsyncadd [#allocation18], 0
          %s355 = sshll.u32 %s7, 4
          %s356 = int_to_ptr.hbm [resolvable:$true] %s355
          %s357 = sshll.u32 [#allocation17], 4
          %s358 = int_to_ptr.vmem [resolvable:$true] %s357
          %360 = dma.hbm_to_vmem [thread:$0]  %s356, 128, %s358, [#allocation18]
        $region44: #{tpu_custom_call.1} parent=11 // pred_fallthru
          _
      $region12: #{tpu_custom_call.1} parent=5 // pred_fallthru
        _
      %p361 = scmp.lt.s32.totalorder %s20, 4
      // Predicated region
      $region45: #{tpu_custom_call.1} parent=5 // pred_check
        %p362 = pneg %p361
      $region46: #{tpu_custom_call.1} parent=5 // pred_check_branch
        %364 = sbr.rel (%p362) target = $region48
      $region47: #{tpu_custom_call.1} parent=5 // pred_region
        _
      $region48: #{tpu_custom_call.1} parent=5 // pred_fallthru
        _
      %p365 = scmp.le.s32.totalorder 1, %s20
      %p366 = scmp.lt.s32.totalorder %s20, 5
      %p367 = pnand %p365, %p366
      %p368 = pneg %p367
      // Predicated region
      $region49: #{tpu_custom_call.1} parent=5 // pred_check
        _
      $region50: #{tpu_custom_call.1} parent=5 // pred_check_branch
        %370 = sbr.rel (%p367) target = $region52
      $region51: #{tpu_custom_call.1} parent=5 // pred_region
        %s371 = ssub.s32 %s20, 1
        // Predicated region
        $region53: #{tpu_custom_call.1} parent=51 // pred_check
          %p372 = pneg %p58
        $region54: #{tpu_custom_call.1} parent=51 // pred_check_branch
          %374 = sbr.rel (%p372) target = $region56
        $region55: #{tpu_custom_call.1} parent=51 // pred_region
          %376 = dma.done [#allocation6], 128
        $region56: #{tpu_custom_call.1} parent=51 // pred_fallthru
          _
        // Predicated region
        $region57: #{tpu_custom_call.1} parent=51 // pred_check
          %p377 = pneg %p84
        $region58: #{tpu_custom_call.1} parent=51 // pred_check_branch
          %379 = sbr.rel (%p377) target = $region60
        $region59: #{tpu_custom_call.1} parent=51 // pred_region
          %381 = dma.done [#allocation9], 128
        $region60: #{tpu_custom_call.1} parent=51 // pred_fallthru
          _
        // Predicated region
        $region61: #{tpu_custom_call.1} parent=51 // pred_check
          %p382 = pneg %p105
        $region62: #{tpu_custom_call.1} parent=51 // pred_check_branch
          %384 = sbr.rel (%p382) target = $region64
        $region63: #{tpu_custom_call.1} parent=51 // pred_region
          %386 = dma.done [#allocation9], 2048
        $region64: #{tpu_custom_call.1} parent=51 // pred_fallthru
          _
        // Predicated region
        $region65: #{tpu_custom_call.1} parent=51 // pred_check
          %p387 = pneg %p126
        $region66: #{tpu_custom_call.1} parent=51 // pred_check_branch
          %389 = sbr.rel (%p387) target = $region68
        $region67: #{tpu_custom_call.1} parent=51 // pred_region
          %391 = dma.done [#allocation12], 2048
        $region68: #{tpu_custom_call.1} parent=51 // pred_fallthru
          _
        // Predicated region
        $region69: #{tpu_custom_call.1} parent=51 // pred_check
          %p392 = pneg %p147
        $region70: #{tpu_custom_call.1} parent=51 // pred_check_branch
          %394 = sbr.rel (%p392) target = $region72
        $region71: #{tpu_custom_call.1} parent=51 // pred_region
          %396 = dma.done [#allocation12], 2048
        $region72: #{tpu_custom_call.1} parent=51 // pred_fallthru
          _
        // Predicated region
        $region73: #{tpu_custom_call.1} parent=51 // pred_check
          %p397 = pneg %p168
        $region74: #{tpu_custom_call.1} parent=51 // pred_check_branch
          %399 = sbr.rel (%p397) target = $region76
        $region75: #{tpu_custom_call.1} parent=51 // pred_region
          %401 = dma.done [#allocation15], 2048
        $region76: #{tpu_custom_call.1} parent=51 // pred_fallthru
          _
        // Predicated region
        $region77: #{tpu_custom_call.1} parent=51 // pred_check
          %p402 = pneg %p189
        $region78: #{tpu_custom_call.1} parent=51 // pred_check_branch
          %404 = sbr.rel (%p402) target = $region80
        $region79: #{tpu_custom_call.1} parent=51 // pred_region
          %406 = dma.done [#allocation15], 2048
        $region80: #{tpu_custom_call.1} parent=51 // pred_fallthru
          _
        // Predicated region
        $region81: #{tpu_custom_call.1} parent=51 // pred_check
          %p407 = pneg %p210
        $region82: #{tpu_custom_call.1} parent=51 // pred_check_branch
          %409 = sbr.rel (%p407) target = $region84
        $region83: #{tpu_custom_call.1} parent=51 // pred_region
          %411 = dma.done [#allocation18], 128
        $region84: #{tpu_custom_call.1} parent=51 // pred_fallthru
          _
        %p412 = pneg %p58
        %p413 = pneg %p55
        %p414 = pneg %p84
        %p415 = pneg %p81
        %p416 = pneg %p105
        %p417 = pneg %p102
        %p418 = pneg %p126
        %p419 = pneg %p123
        %p420 = pneg %p147
        %p421 = pneg %p144
        %p422 = pneg %p168
        %p423 = pneg %p165
        %p424 = pneg %p189
        %p425 = pneg %p186
        %p426 = pneg %p210
        %p427 = pneg %p207
        %p428 = pneg %p236
        %p429 = pneg %p233
        %p430 = scmp.eq.s32.totalorder %s29, 0
        %p431 = scmp.eq.s32.totalorder %s30, 0
        %p432 = pnand %p430, %p431
        %p433 = pneg %p432
        // Predicated region
        $region85: #{tpu_custom_call.1} parent=51 // pred_check
          _
        $region86: #{tpu_custom_call.1} parent=51 // pred_check_branch
          %435 = sbr.rel (%p432) target = $region88
        $region87: #{tpu_custom_call.1} parent=51 // pred_region
          %436 = vst [vmem:[#allocation2] sm:$0x3] 0.0
        $region88: #{tpu_custom_call.1} parent=51 // pred_fallthru
          _
        %p437 = scmp.eq.s32.totalorder %s29, 1
        %p438 = pnand %p437, %p431
        %p439 = pneg %p438
        // Predicated region
        $region89: #{tpu_custom_call.1} parent=51 // pred_check
          _
        $region90: #{tpu_custom_call.1} parent=51 // pred_check_branch
          %441 = sbr.rel (%p438) target = $region92
        $region91: #{tpu_custom_call.1} parent=51 // pred_region
          %v442 = vld [vmem:[#allocation17] sm:$0x1]
          %v443 = vld [vmem:[#allocation17 + $0x1] sm:$0x1]
          %v444 = vld [vmem:[#allocation2] sm:$0x1]
          %v445 = vmul.f32 %v444, 0.125
          %v446 = vld [vmem:[#allocation2 + $0x1] sm:$0x1]
          %v447 = vmul.f32 %v446, 0.125
          %v448 = vmul.f32 %v445, %v445
          %v449 = vsub.f32 %v447, %v448
          %v450 = vadd.f32 %v449, 1e-05
          %v451 = vrsqrt.pop %v450
          %v452 = vmul.f32 %v451, %v450
          %v453 = vmul.f32 %v452, %v451
          %v454 = vmul.f32 0.5, %v453
          %v455 = vsub.f32 1.5, %v454
          %v456 = vmul.f32 %v451, %v455
          %vm457 = vweird.f32 %v450
          %vm458 = vweird.f32 %v451
          %vm459 = vmor %vm457, %vm458
          %v460 = vsel %vm459, %v451, %v456
          %v461 = vmul.f32 %v442, %v460
          %462 = vst [vmem:[#allocation2] sm:$0x1] %v461
          %v463 = vmul.f32 %v445, %v461
          %v464 = vsub.f32 %v443, %v463
          %465 = vst [vmem:[#allocation2 + $0x1] sm:$0x1] %v464
          %466 = vst [vmem:[#allocation3] sm:$0x3] 0.0
        $region92: #{tpu_custom_call.1} parent=51 // pred_fallthru
          _
        %p467 = scmp.eq.s32.totalorder %s29, 2
        %p468 = pnand %p467, %p431
        %p469 = pneg %p468
        // Predicated region
        $region93: #{tpu_custom_call.1} parent=51 // pred_check
          _
        $region94: #{tpu_custom_call.1} parent=51 // pred_check_branch
          %471 = sbr.rel (%p468) target = $region96
        $region95: #{tpu_custom_call.1} parent=51 // pred_region
          %v472 = vld [vmem:[#allocation17 + $0x2] sm:$0x1]
          %v473 = vld [vmem:[#allocation17 + $0x3] sm:$0x1]
          %v474 = vld [vmem:[#allocation3] sm:$0x1]
          %v475 = vmul.f32 %v474, 0.125
          %v476 = vld [vmem:[#allocation3 + $0x1] sm:$0x1]
          %v477 = vmul.f32 %v476, 0.125
          %v478 = vmul.f32 %v475, %v475
          %v479 = vsub.f32 %v477, %v478
          %v480 = vadd.f32 %v479, 1e-05
          %v481 = vrsqrt.pop %v480
          %v482 = vmul.f32 %v481, %v480
          %v483 = vmul.f32 %v482, %v481
          %v484 = vmul.f32 0.5, %v483
          %v485 = vsub.f32 1.5, %v484
          %v486 = vmul.f32 %v481, %v485
          %vm487 = vweird.f32 %v480
          %vm488 = vweird.f32 %v481
          %vm489 = vmor %vm487, %vm488
          %v490 = vsel %vm489, %v481, %v486
          %v491 = vmul.f32 %v472, %v490
          %492 = vst [vmem:[#allocation3] sm:$0x1] %v491
          %v493 = vmul.f32 %v475, %v491
          %v494 = vsub.f32 %v473, %v493
          %495 = vst [vmem:[#allocation3 + $0x1] sm:$0x1] %v494
          %496 = vst [vmem:[#allocation4] sm:$0x3] 0.0
        $region96: #{tpu_custom_call.1} parent=51 // pred_fallthru
          _
        %p497 = scmp.eq.s32.totalorder %s29, 3
        %p498 = pnand %p497, %p431
        %p499 = pneg %p498
        // Predicated region
        $region97: #{tpu_custom_call.1} parent=51 // pred_check
          _
        $region98: #{tpu_custom_call.1} parent=51 // pred_check_branch
          %501 = sbr.rel (%p498) target = $region100
        $region99: #{tpu_custom_call.1} parent=51 // pred_region
          %v502 = vld [vmem:[#allocation17 + $0x4] sm:$0x1]
          %v503 = vld [vmem:[#allocation17 + $0x5] sm:$0x1]
          %v504 = vld [vmem:[#allocation4] sm:$0x1]
          %v505 = vmul.f32 %v504, 0.125
          %v506 = vld [vmem:[#allocation4 + $0x1] sm:$0x1]
          %v507 = vmul.f32 %v506, 0.125
          %v508 = vmul.f32 %v505, %v505
          %v509 = vsub.f32 %v507, %v508
          %v510 = vadd.f32 %v509, 1e-05
          %v511 = vrsqrt.pop %v510
          %v512 = vmul.f32 %v511, %v510
          %v513 = vmul.f32 %v512, %v511
          %v514 = vmul.f32 0.5, %v513
          %v515 = vsub.f32 1.5, %v514
          %v516 = vmul.f32 %v511, %v515
          %vm517 = vweird.f32 %v510
          %vm518 = vweird.f32 %v511
          %vm519 = vmor %vm517, %vm518
          %v520 = vsel %vm519, %v511, %v516
          %v521 = vmul.f32 %v502, %v520
          %522 = vst [vmem:[#allocation4] sm:$0x1] %v521
          %v523 = vmul.f32 %v505, %v521
          %v524 = vsub.f32 %v503, %v523
          %525 = vst [vmem:[#allocation4 + $0x1] sm:$0x1] %v524
        $region100: #{tpu_custom_call.1} parent=51 // pred_fallthru
          _
        %v526 = vld [vmem:[#allocation5] sm:$0xff]
        %v527 = vld [vmem:[#allocation10] sm:$0xff]
        %v528 = vld [vmem:[#allocation10 + $0x8] sm:$0xff]
        %v529 = vld [vmem:[#allocation10 + $0x10] sm:$0xff]
        %v530 = vld [vmem:[#allocation10 + $0x18] sm:$0xff]
        %v531 = vld [vmem:[#allocation10 + $0x20] sm:$0xff]
        %v532 = vld [vmem:[#allocation10 + $0x28] sm:$0xff]
        %v533 = vld [vmem:[#allocation10 + $0x30] sm:$0xff]
        %v534 = vld [vmem:[#allocation10 + $0x38] sm:$0xff]
        %v535 = vld [vmem:[#allocation10 + $0x40] sm:$0xff]
        %v536 = vld [vmem:[#allocation10 + $0x48] sm:$0xff]
        %v537 = vld [vmem:[#allocation10 + $0x50] sm:$0xff]
        %v538 = vld [vmem:[#allocation10 + $0x58] sm:$0xff]
        %v539 = vld [vmem:[#allocation10 + $0x60] sm:$0xff]
        %v540 = vld [vmem:[#allocation10 + $0x68] sm:$0xff]
        %v541 = vld [vmem:[#allocation10 + $0x70] sm:$0xff]
        %v542 = vld [vmem:[#allocation10 + $0x78] sm:$0xff]
        %543 = vmatpush.msra.mxu0 %v542
        %544 = vmatpush.msra.mxu0 %v541
        %545 = vmatpush.msra.mxu0 %v540
        %546 = vmatpush.msra.mxu0 %v539
        %547 = vmatpush.msra.mxu0 %v538
        %548 = vmatpush.msra.mxu0 %v537
        %549 = vmatpush.msra.mxu0 %v536
        %550 = vmatpush.msra.mxu0 %v535
        %551 = vmatpush.msra.mxu0 %v534
        %552 = vmatpush.msra.mxu0 %v533
        %553 = vmatpush.msra.mxu0 %v532
        %554 = vmatpush.msra.mxu0 %v531
        %555 = vmatpush.msra.mxu0 %v530
        %556 = vmatpush.msra.mxu0 %v529
        %557 = vmatpush.msra.mxu0 %v528
        %558 = vmatpush.msra.mxu0 %v527
        %559 = vmatmul.f32.gmra.mxu0 %v526
        %v560 = vpop.f32.mrf.mxu0
        %v561 = vadd.f32 0.0, %v560
        %562 = vdwg.mxu0
        // Predicated region
        $region101: #{tpu_custom_call.1} parent=51 // pred_check
          %p563 = pneg %p430
        $region102: #{tpu_custom_call.1} parent=51 // pred_check_branch
          %565 = sbr.rel (%p563) target = $region104
        $region103: #{tpu_custom_call.1} parent=51 // pred_region
          %v566 = vld [vmem:[#allocation2] sm:$0x1]
          %v567 = vrot.slane %v561, 4
          %v568 = vadd.f32 %v561, %v567
          %v569 = vrot.slane %v568, 2
          %v570 = vadd.f32 %v568, %v569
          %v571 = vrot.slane %v570, 1
          %v572 = vadd.f32 %v570, %v571
          %v573 = vadd.f32 %v566, %v572
          %574 = vst [vmem:[#allocation2] sm:$0x1] %v573
          %v575 = vld [vmem:[#allocation2 + $0x1] sm:$0x1]
          %v576 = vmul.f32 %v561, %v561
          %v577 = vrot.slane %v576, 4
          %v578 = vadd.f32 %v576, %v577
          %v579 = vrot.slane %v578, 2
          %v580 = vadd.f32 %v578, %v579
          %v581 = vrot.slane %v580, 1
          %v582 = vadd.f32 %v580, %v581
          %v583 = vadd.f32 %v575, %v582
          %584 = vst [vmem:[#allocation2 + $0x1] sm:$0x1] %v583
        $region104: #{tpu_custom_call.1} parent=51 // pred_fallthru
          _
        %p585 = scmp.ge.s32.totalorder %s29, 1
        // Predicated region
        $region105: #{tpu_custom_call.1} parent=51 // pred_check
          %p586 = pneg %p585
        $region106: #{tpu_custom_call.1} parent=51 // pred_check_branch
          %588 = sbr.rel (%p586) target = $region108
        $region107: #{tpu_custom_call.1} parent=51 // pred_region
          %v589 = vld [vmem:[#allocation2] sm:$0x1]
          %v590 = vperm.slane %v589, 0
          %v591 = vmul.f32 %v561, %v590
          %v592 = vld [vmem:[#allocation2 + $0x1] sm:$0x1]
          %v593 = vperm.slane %v592, 0
          %v594 = vadd.f32 %v591, %v593
          %v595 = vmax.f32 %v594, 0.0
          %v596 = vld [vmem:[#allocation11] sm:$0xff]
          %v597 = vld [vmem:[#allocation11 + $0x8] sm:$0xff]
          %v598 = vld [vmem:[#allocation11 + $0x10] sm:$0xff]
          %v599 = vld [vmem:[#allocation11 + $0x18] sm:$0xff]
          %v600 = vld [vmem:[#allocation11 + $0x20] sm:$0xff]
          %v601 = vld [vmem:[#allocation11 + $0x28] sm:$0xff]
          %v602 = vld [vmem:[#allocation11 + $0x30] sm:$0xff]
          %v603 = vld [vmem:[#allocation11 + $0x38] sm:$0xff]
          %v604 = vld [vmem:[#allocation11 + $0x40] sm:$0xff]
          %v605 = vld [vmem:[#allocation11 + $0x48] sm:$0xff]
          %v606 = vld [vmem:[#allocation11 + $0x50] sm:$0xff]
          %v607 = vld [vmem:[#allocation11 + $0x58] sm:$0xff]
          %v608 = vld [vmem:[#allocation11 + $0x60] sm:$0xff]
          %v609 = vld [vmem:[#allocation11 + $0x68] sm:$0xff]
          %v610 = vld [vmem:[#allocation11 + $0x70] sm:$0xff]
          %v611 = vld [vmem:[#allocation11 + $0x78] sm:$0xff]
          %v612 = vld [vmem:[#allocation8] sm:$0xff]
          %v613 = vld [vmem:[#allocation13] sm:$0xff]
          %v614 = vld [vmem:[#allocation13 + $0x8] sm:$0xff]
          %v615 = vld [vmem:[#allocation13 + $0x10] sm:$0xff]
          %v616 = vld [vmem:[#allocation13 + $0x18] sm:$0xff]
          %v617 = vld [vmem:[#allocation13 + $0x20] sm:$0xff]
          %v618 = vld [vmem:[#allocation13 + $0x28] sm:$0xff]
          %v619 = vld [vmem:[#allocation13 + $0x30] sm:$0xff]
          %v620 = vld [vmem:[#allocation13 + $0x38] sm:$0xff]
          %v621 = vld [vmem:[#allocation13 + $0x40] sm:$0xff]
          %v622 = vld [vmem:[#allocation13 + $0x48] sm:$0xff]
          %v623 = vld [vmem:[#allocation13 + $0x50] sm:$0xff]
          %v624 = vld [vmem:[#allocation13 + $0x58] sm:$0xff]
          %v625 = vld [vmem:[#allocation13 + $0x60] sm:$0xff]
          %v626 = vld [vmem:[#allocation13 + $0x68] sm:$0xff]
          %v627 = vld [vmem:[#allocation13 + $0x70] sm:$0xff]
          %v628 = vld [vmem:[#allocation13 + $0x78] sm:$0xff]
          %629 = vmatpush.msra.mxu0 %v628
          %630 = vmatpush.msra.mxu0 %v627
          %631 = vmatpush.msra.mxu0 %v626
          %632 = vmatpush.msra.mxu0 %v625
          %633 = vmatpush.msra.mxu0 %v624
          %634 = vmatpush.msra.mxu0 %v623
          %635 = vmatpush.msra.mxu0 %v622
          %636 = vmatpush.msra.mxu0 %v621
          %637 = vmatpush.msra.mxu0 %v620
          %638 = vmatpush.msra.mxu0 %v619
          %639 = vmatpush.msra.mxu0 %v618
          %640 = vmatpush.msra.mxu0 %v617
          %641 = vmatpush.msra.mxu0 %v616
          %642 = vmatpush.msra.mxu0 %v615
          %643 = vmatpush.msra.mxu0 %v614
          %644 = vmatpush.msra.mxu0 %v613
          %645 = vmatmul.f32.gmra.mxu0 %v612
          %v646 = vpop.f32.mrf.mxu0
          %v647 = vadd.f32 0.0, %v646
          %648 = vdwg.mxu0
          %649 = vmatpush.msra.mxu0 %v611
          %650 = vmatpush.msra.mxu0 %v610
          %651 = vmatpush.msra.mxu0 %v609
          %652 = vmatpush.msra.mxu0 %v608
          %653 = vmatpush.msra.mxu0 %v607
          %654 = vmatpush.msra.mxu0 %v606
          %655 = vmatpush.msra.mxu0 %v605
          %656 = vmatpush.msra.mxu0 %v604
          %657 = vmatpush.msra.mxu0 %v603
          %658 = vmatpush.msra.mxu0 %v602
          %659 = vmatpush.msra.mxu0 %v601
          %660 = vmatpush.msra.mxu0 %v600
          %661 = vmatpush.msra.mxu0 %v599
          %662 = vmatpush.msra.mxu0 %v598
          %663 = vmatpush.msra.mxu0 %v597
          %664 = vmatpush.msra.mxu0 %v596
          %665 = vmatmul.f32.gmra.mxu0 %v595
          %v666 = vpop.f32.mrf.mxu0
          %v667 = vadd.f32 %v647, %v666
          %668 = vdwg.mxu0
          // Predicated region
          $region109: #{tpu_custom_call.1} parent=107 // pred_check
            %p669 = pneg %p437
          $region110: #{tpu_custom_call.1} parent=107 // pred_check_branch
            %671 = sbr.rel (%p669) target = $region112
          $region111: #{tpu_custom_call.1} parent=107 // pred_region
            %v672 = vld [vmem:[#allocation3] sm:$0x1]
            %v673 = vrot.slane %v667, 4
            %v674 = vadd.f32 %v667, %v673
            %v675 = vrot.slane %v674, 2
            %v676 = vadd.f32 %v674, %v675
            %v677 = vrot.slane %v676, 1
            %v678 = vadd.f32 %v676, %v677
            %v679 = vadd.f32 %v672, %v678
            %680 = vst [vmem:[#allocation3] sm:$0x1] %v679
            %v681 = vld [vmem:[#allocation3 + $0x1] sm:$0x1]
            %v682 = vmul.f32 %v667, %v667
            %v683 = vrot.slane %v682, 4
            %v684 = vadd.f32 %v682, %v683
            %v685 = vrot.slane %v684, 2
            %v686 = vadd.f32 %v684, %v685
            %v687 = vrot.slane %v686, 1
            %v688 = vadd.f32 %v686, %v687
            %v689 = vadd.f32 %v681, %v688
            %690 = vst [vmem:[#allocation3 + $0x1] sm:$0x1] %v689
          $region112: #{tpu_custom_call.1} parent=107 // pred_fallthru
            _
          %p691 = scmp.ge.s32.totalorder %s29, 2
          // Predicated region
          $region113: #{tpu_custom_call.1} parent=107 // pred_check
            %p692 = pneg %p691
          $region114: #{tpu_custom_call.1} parent=107 // pred_check_branch
            %694 = sbr.rel (%p692) target = $region116
          $region115: #{tpu_custom_call.1} parent=107 // pred_region
            %v695 = vld [vmem:[#allocation3] sm:$0x1]
            %v696 = vperm.slane %v695, 0
            %v697 = vmul.f32 %v667, %v696
            %v698 = vld [vmem:[#allocation3 + $0x1] sm:$0x1]
            %v699 = vperm.slane %v698, 0
            %v700 = vadd.f32 %v697, %v699
            %v701 = vmax.f32 %v700, 0.0
            %v702 = vld [vmem:[#allocation14] sm:$0xff]
            %v703 = vld [vmem:[#allocation14 + $0x8] sm:$0xff]
            %v704 = vld [vmem:[#allocation14 + $0x10] sm:$0xff]
            %v705 = vld [vmem:[#allocation14 + $0x18] sm:$0xff]
            %v706 = vld [vmem:[#allocation14 + $0x20] sm:$0xff]
            %v707 = vld [vmem:[#allocation14 + $0x28] sm:$0xff]
            %v708 = vld [vmem:[#allocation14 + $0x30] sm:$0xff]
            %v709 = vld [vmem:[#allocation14 + $0x38] sm:$0xff]
            %v710 = vld [vmem:[#allocation14 + $0x40] sm:$0xff]
            %v711 = vld [vmem:[#allocation14 + $0x48] sm:$0xff]
            %v712 = vld [vmem:[#allocation14 + $0x50] sm:$0xff]
            %v713 = vld [vmem:[#allocation14 + $0x58] sm:$0xff]
            %v714 = vld [vmem:[#allocation14 + $0x60] sm:$0xff]
            %v715 = vld [vmem:[#allocation14 + $0x68] sm:$0xff]
            %v716 = vld [vmem:[#allocation14 + $0x70] sm:$0xff]
            %v717 = vld [vmem:[#allocation14 + $0x78] sm:$0xff]
            %718 = vmatpush.msra.mxu0 %v717
            %719 = vmatpush.msra.mxu0 %v716
            %720 = vmatpush.msra.mxu0 %v715
            %721 = vmatpush.msra.mxu0 %v714
            %722 = vmatpush.msra.mxu0 %v713
            %723 = vmatpush.msra.mxu0 %v712
            %724 = vmatpush.msra.mxu0 %v711
            %725 = vmatpush.msra.mxu0 %v710
            %726 = vmatpush.msra.mxu0 %v709
            %727 = vmatpush.msra.mxu0 %v708
            %728 = vmatpush.msra.mxu0 %v707
            %729 = vmatpush.msra.mxu0 %v706
            %730 = vmatpush.msra.mxu0 %v705
            %731 = vmatpush.msra.mxu0 %v704
            %732 = vmatpush.msra.mxu0 %v703
            %733 = vmatpush.msra.mxu0 %v702
            %734 = vmatmul.f32.gmra.mxu0 %v701
            %v735 = vpop.f32.mrf.mxu0
            %v736 = vadd.f32 0.0, %v735
            %737 = vdwg.mxu0
            // Predicated region
            $region117: #{tpu_custom_call.1} parent=115 // pred_check
              %p738 = pneg %p467
            $region118: #{tpu_custom_call.1} parent=115 // pred_check_branch
              %740 = sbr.rel (%p738) target = $region120
            $region119: #{tpu_custom_call.1} parent=115 // pred_region
              %v741 = vld [vmem:[#allocation4] sm:$0x1]
              %v742 = vrot.slane %v736, 4
              %v743 = vadd.f32 %v736, %v742
              %v744 = vrot.slane %v743, 2
              %v745 = vadd.f32 %v743, %v744
              %v746 = vrot.slane %v745, 1
              %v747 = vadd.f32 %v745, %v746
              %v748 = vadd.f32 %v741, %v747
              %749 = vst [vmem:[#allocation4] sm:$0x1] %v748
              %v750 = vld [vmem:[#allocation4 + $0x1] sm:$0x1]
              %v751 = vmul.f32 %v736, %v736
              %v752 = vrot.slane %v751, 4
              %v753 = vadd.f32 %v751, %v752
              %v754 = vrot.slane %v753, 2
              %v755 = vadd.f32 %v753, %v754
              %v756 = vrot.slane %v755, 1
              %v757 = vadd.f32 %v755, %v756
              %v758 = vadd.f32 %v750, %v757
              %759 = vst [vmem:[#allocation4 + $0x1] sm:$0x1] %v758
            $region120: #{tpu_custom_call.1} parent=115 // pred_fallthru
              _
            // Predicated region
            $region121: #{tpu_custom_call.1} parent=115 // pred_check
              %p760 = pneg %p497
            $region122: #{tpu_custom_call.1} parent=115 // pred_check_branch
              %762 = sbr.rel (%p760) target = $region124
            $region123: #{tpu_custom_call.1} parent=115 // pred_region
              %v763 = vld [vmem:[#allocation4] sm:$0x1]
              %v764 = vperm.slane %v763, 0
              %v765 = vmul.f32 %v736, %v764
              %v766 = vld [vmem:[#allocation4 + $0x1] sm:$0x1]
              %v767 = vperm.slane %v766, 0
              %v768 = vadd.f32 %v765, %v767
              %v769 = vmax.f32 %v768, 0.0
              %v770 = vld [vmem:[#allocation16] sm:$0xff]
              %v771 = vld [vmem:[#allocation16 + $0x8] sm:$0xff]
              %v772 = vld [vmem:[#allocation16 + $0x10] sm:$0xff]
              %v773 = vld [vmem:[#allocation16 + $0x18] sm:$0xff]
              %v774 = vld [vmem:[#allocation16 + $0x20] sm:$0xff]
              %v775 = vld [vmem:[#allocation16 + $0x28] sm:$0xff]
              %v776 = vld [vmem:[#allocation16 + $0x30] sm:$0xff]
              %v777 = vld [vmem:[#allocation16 + $0x38] sm:$0xff]
              %v778 = vld [vmem:[#allocation16 + $0x40] sm:$0xff]
              %v779 = vld [vmem:[#allocation16 + $0x48] sm:$0xff]
              %v780 = vld [vmem:[#allocation16 + $0x50] sm:$0xff]
              %v781 = vld [vmem:[#allocation16 + $0x58] sm:$0xff]
              %v782 = vld [vmem:[#allocation16 + $0x60] sm:$0xff]
              %v783 = vld [vmem:[#allocation16 + $0x68] sm:$0xff]
              %v784 = vld [vmem:[#allocation16 + $0x70] sm:$0xff]
              %v785 = vld [vmem:[#allocation16 + $0x78] sm:$0xff]
              %v786 = vld [vmem:[#allocation17 + $0x6] sm:$0x1]
              %v787 = vperm.slane %v786, 0
              %788 = vmatpush.msra.mxu0 %v785
              %789 = vmatpush.msra.mxu0 %v784
              %790 = vmatpush.msra.mxu0 %v783
              %791 = vmatpush.msra.mxu0 %v782
              %792 = vmatpush.msra.mxu0 %v781
              %793 = vmatpush.msra.mxu0 %v780
              %794 = vmatpush.msra.mxu0 %v779
              %795 = vmatpush.msra.mxu0 %v778
              %796 = vmatpush.msra.mxu0 %v777
              %797 = vmatpush.msra.mxu0 %v776
              %798 = vmatpush.msra.mxu0 %v775
              %799 = vmatpush.msra.mxu0 %v774
              %800 = vmatpush.msra.mxu0 %v773
              %801 = vmatpush.msra.mxu0 %v772
              %802 = vmatpush.msra.mxu0 %v771
              %803 = vmatpush.msra.mxu0 %v770
              %804 = vmatmul.f32.gmra.mxu0 %v769
              %v805 = vpop.f32.mrf.mxu0
              %v806 = vadd.f32 %v787, %v805
              %807 = vdwg.mxu0
              %808 = vmax.xlane.f32.xlu0 %v806
              %v809 = vpop.xlane.xlu0 %808
              %v810 = vsub.f32 %v806, %v809
              %v811 = vmul.f32 %v810, 1.442695
              %v812 = vpow.pop %v811
              %813 = vadd.xlane.f32.xlu0 %v812
              %v814 = vpop.xlane.xlu0 %813
              %v815 = vrcp.pop %v814
              %v816 = vmul.f32 %v814, %v815
              %v817 = vsub.f32 1.0, %v816
              %v818 = vmul.f32 %v815, %v817
              %v819 = vadd.f32 %v815, %v818
              %vm820 = vweird.f32 %v814
              %vm821 = vweird.f32 %v815
              %vm822 = vmor %vm820, %vm821
              %v823 = vsel %vm822, %v815, %v819
              %v824 = vand.u32 2147483647, %v814
              %vm825 = vcmp.eq.f32.partialorder %v824, 8.507059e+37
              %v826 = vand.u32 %v814, 2147483648
              %v827 = vor.u32 1.1754944e-38, %v826
              %v828 = vsel %vm825, %v827, %v823
              %v829 = vmul.f32 %v812, %v828
              %830 = vst [vmem:[#allocation19] sm:$0xff] %v829
            $region124: #{tpu_custom_call.1} parent=115 // pred_fallthru
              _
          $region116: #{tpu_custom_call.1} parent=107 // pred_fallthru
            _
        $region108: #{tpu_custom_call.1} parent=51 // pred_fallthru
          _
        // Predicated region
        $region125: #{tpu_custom_call.1} parent=51 // pred_check
          %p831 = pneg %p233
        $region126: #{tpu_custom_call.1} parent=51 // pred_check_branch
          %833 = sbr.rel (%p831) target = $region128
        $region127: #{tpu_custom_call.1} parent=51 // pred_region
          %835 = vsyncadd [#allocation7], 0
          %s836 = smul.addr %s30, 8
          %s837 = scalar_lea.hbm %s8, %s836
          %s839 = sshll.u32 [#allocation19], 4
          %s840 = int_to_ptr.vmem [resolvable:$true] %s839
          %s841 = sshll.u32 %s837, 4
          %s842 = int_to_ptr.hbm [resolvable:$true] %s841
          %844 = dma.vmem_to_hbm [thread:$0]  %s840, 128, %s842, [#allocation7]
        $region128: #{tpu_custom_call.1} parent=51 // pred_fallthru
          _
        // Predicated region
        $region129: #{tpu_custom_call.1} parent=51 // pred_check
          %p845 = pneg %p233
        $region130: #{tpu_custom_call.1} parent=51 // pred_check_branch
          %847 = sbr.rel (%p845) target = $region132
        $region131: #{tpu_custom_call.1} parent=51 // pred_region
          %849 = dma.done [#allocation7], 128
        $region132: #{tpu_custom_call.1} parent=51 // pred_fallthru
          _
      $region52: #{tpu_custom_call.1} parent=5 // pred_fallthru
        _
      %p850 = scmp.le.s32.totalorder 2, %s20
      // Predicated region
      $region133: #{tpu_custom_call.1} parent=5 // pred_check
        %p851 = pneg %p850
      $region134: #{tpu_custom_call.1} parent=5 // pred_check_branch
        %853 = sbr.rel (%p851) target = $region136
      $region135: #{tpu_custom_call.1} parent=5 // pred_region
        %s854 = ssub.s32 %s20, 2
      $region136: #{tpu_custom_call.1} parent=5 // pred_fallthru
        _
    $region6: #{tpu_custom_call.1} parent=1 // loop_footer
      %s24 = sadd.s32 1, %s20
    $region7: #{tpu_custom_call.1} parent=1 // loop_footer_branch
      %19 = sbr.rel target = $region3
    $region8: #{tpu_custom_call.1} parent=1 // loop_exit
      _
    %855 = vsyncpa [#allocation6], 1
    %s856 = scalar_lea.sflag [#allocation6], 1
    %857 = vsyncpa %s856, 1
    %858 = vsyncpa [#allocation9], 1
    %859 = vsyncpa [#allocation12], 1
    %860 = vsyncpa [#allocation15], 1
    %861 = vsyncpa [#allocation18], 1
    %862 = vsyncpa [#allocation7], 1
    %s863 = scalar_lea.sflag [#allocation7], 1
    %864 = vsyncpa %s863, 1

</llo_original>
